<compile_context>
chip_gen: v6e
topology: v6e:2x2x1
jax: 0.10.0
libtpu: 0.0.40
codegen_flags: <defaults>
</compile_context>

<pallas_src>
import functools
import math

import jax
import jax.numpy as jnp
from jax.experimental import pallas as pl
from jax.experimental.pallas import tpu as pltpu

_NEG = -1e30  # stand-in for -inf in masked_fill_; identical softmax whenever a row has >=1 unmasked entry


def _hier_attn_kernel(q_ref, ctx_ref, bias_ref, wq_ref, wc_ref, vec_ref, seg_ref,
                      out_ref, sc_ref, *, chunk_words):
    """One grid step == one batch block of Bt elements. All hot-path compute lives here."""
    f32, bf16 = jnp.float32, jnp.bfloat16
    Bt, Q, D = q_ref.shape
    Sp, SW = seg_ref.shape          # padded span count (multiple of 8), Sp * W
    CW = chunk_words                # words per span-chunk (multiple of 8)

    # ---- grid-invariant small operands -------------------------------------------------
    wq = wq_ref[...]                # (D, 2D) bf16: cols [:D] = span-query half, [D:] = word-query half
    wc_s = wc_ref[0:D, :]           # (D, D) bf16   x @ wc_s == x @ Wc_s.T
    wc_w = wc_ref[D:2 * D, :]       # (D, D) bf16
    b_s = vec_ref[0:1, :]           # (1, D) f32
    sw_s = vec_ref[1:2, :]
    b_w = vec_ref[2:3, :]
    sw_w = vec_ref[3:4, :]
    seg = seg_ref[...]              # (Sp, SW) bf16 0/1: word w belongs to span s (exact in bf16)

    bias = bias_ref[...]            # (Bt, 1, SW+Sp) f32 additive mask (-1e30 where masked)
    wbias = bias[:, :, 0:SW]
    sbias = bias[:, :, SW:SW + Sp]

    def leaky(x):                   # F.leaky_relu, default negative_slope = 0.01
        return jnp.where(x >= 0, x, 0.01 * x)

    # ---- shared query projection: ONE bf16 MXU matmul for both attention heads ---------
    q2 = q_ref[...].reshape(Bt * Q, D)                                 # leading-dim merge (Q % 8 == 0)
    qp = jnp.dot(q2, wq, preferred_element_type=f32)                   # (Bt*Q, 2D) f32
    qp_s = (qp[:, 0:D] + b_s).reshape(Bt, Q, D)
    qp_w = (qp[:, D:2 * D] + b_w).reshape(Bt, Q, D)

    # ---- span attention (mix=False): only the attention weights ------------------------
    # w(cat(q, c)) == q @ Wq.T + c @ Wc.T + b
    sctx = ctx_ref[:, SW:SW + Sp, :]                                   # (Bt, Sp, D) bf16
    cp_s = jnp.dot(sctx.reshape(Bt * Sp, D), wc_s,
                   preferred_element_type=f32).reshape(Bt, Sp, D)
    h_s = leaky(qp_s[:, :, None, :] + cp_s[:, None, :, :])             # (Bt, Q, Sp, D) f32
    sc_s = jnp.sum(h_s * sw_s, axis=-1) + sbias                        # (Bt, Q, Sp)
    sc_s = sc_s - jnp.max(sc_s, axis=-1, keepdims=True)
    e_s = jnp.exp(sc_s)
    attn_s = e_s * pl.reciprocal(jnp.sum(e_s, axis=-1, keepdims=True), approx=True)

    # ---- word attention scores (mix=True), chunked over span groups --------------------
    # Static Python loop: each iteration ends in a VMEM scratch store with static offsets
    # (chunk_words is a multiple of 8), so the (Bt, Q, CW, D) intermediate is dead before
    # the next chunk starts -> bounded live vregs, no spills at production SW.
    for c in range(SW // CW):
        lo, hi = c * CW, (c + 1) * CW
        wctx_c = ctx_ref[:, lo:hi, :]                                  # (Bt, CW, D) bf16
        cp_c = jnp.dot(wctx_c.reshape(Bt * CW, D), wc_w,
                       preferred_element_type=f32).reshape(Bt, CW, D)
        h_c = leaky(qp_w[:, :, None, :] + cp_c[:, None, :, :])         # (Bt, Q, CW, D) f32
        sc_ref[:, :, lo:hi] = jnp.sum(h_c * sw_w, axis=-1) + wbias[:, :, lo:hi]

    # ---- per-span softmax via segment matmuls (no risky (S,W)<->(S*W) relayouts) -------
    # Shift by the row-wide max: the shift cancels inside each span's normalization, so
    # the per-span softmax is exact; masked entries exp() to exactly 0.
    # (Caveat: a span whose scores sit >~88 below the row max underflows to denom==0 and
    #  is dropped by the guard; unreachable at these score magnitudes.)
    sc_w = sc_ref[...]                                                 # (Bt, Q, SW) f32
    sc_w = sc_w - jnp.max(sc_w, axis=-1, keepdims=True)
    ew = jnp.exp(sc_w).reshape(Bt * Q, SW)                             # f32

    # per-span denominators: contract the SW axis of ew against the SW axis of seg
    denom = jax.lax.dot_general(ew.astype(bf16), seg, (((1,), (1,)), ((), ())),
                                preferred_element_type=f32)            # (Bt*Q, Sp)
    attn_s2 = attn_s.reshape(Bt * Q, Sp)
    scale = jnp.where(denom > 0.0,
                      attn_s2 * pl.reciprocal(denom, approx=True),
                      0.0)                                             # guard padded / empty spans
    expand = jnp.dot(scale.astype(bf16), seg, preferred_element_type=f32)   # (Bt*Q, SW)
    cw = (ew * expand).reshape(Bt, Q, SW)

    # ---- fused hierarchical combine: ONE batched (Q, SW+Sp) x (SW+Sp, D) matmul --------
    # out = sum_s attn_s[s] * (span_context[s] + sum_w attn_w[s,w] * word_context[s,w])
    attn_all = jnp.concatenate([cw, attn_s], axis=-1).astype(bf16)     # (Bt, Q, SW+Sp)
    out = jnp.einsum("bqk,bkd->bqd", attn_all, ctx_ref[...],
                     preferred_element_type=f32)
    out_ref[...] = out.astype(out_ref.dtype)


def _pick_batch_block(B, Q, ctx_rows, D, vmem_budget=32 << 20):
    """Pick Bt such that (a) Bt*Q ~ 256 (fills the 2x256^2 v6e/v7x MXU M dim, amortizes
    the ~0.35us per-grid-step overhead), (b) the grid has >= 2 steps whenever B >= 2
    (both v7x TensorCores get work + DMA/compute overlap), and (c) the double-buffered
    bf16 context block stays inside the VMEM budget."""
    target = max(1, 256 // max(Q, 1))
    cap = max(1, vmem_budget // max(1, 4 * ctx_rows * D * 2))   # 2 bufs + ~2x headroom
    cap = min(cap, target)
    if B >= 2:
        cap = min(cap, B // 2)
    cap = max(cap, 1)
    bt = 1
    for c in range(1, min(B, cap) + 1):
        if B % c == 0:
            bt = c
    return bt


def _pick_chunk_words(Sp, W, Bt, Q, D, live_budget=2 << 20):
    """Span-chunk size (in words) for the word-score loop: chunk_words % 8 == 0 so the
    (Bt, CW, D) -> (Bt*CW, D) reshape is layout-preserving, and the f32 (Bt, Q, CW, D)
    intermediate stays under ~live_budget bytes."""
    base = 8 // math.gcd(W, 8)                 # min spans per chunk (Sp is a multiple of 8)
    per_span = Bt * Q * W * D * 4
    max_spans = max(base, live_budget // max(per_span, 1))
    best = base
    k = base
    while k <= Sp:
        if Sp % k == 0 and k <= max_spans:
            best = k
        k += base
    return best * W


def hierarchical_attention(query, span_context, word_contexts, span_mask, word_masks, params):
    f32, bf16 = jnp.float32, jnp.bfloat16
    B, Q, D = query.shape
    S = span_context.shape[1]
    W = word_contexts.shape[2]

    # Pad the span axis to a multiple of 8 so every in-kernel reshape merges/splits
    # leading dims only. Padded spans are fully masked -> exactly zero contribution.
    Sp = -(-S // 8) * 8
    ps = Sp - S
    SW = Sp * W

    sctx = jnp.pad(span_context, ((0, 0), (0, ps), (0, 0))).astype(bf16)
    wctx = jnp.pad(word_contexts, ((0, 0), (0, ps), (0, 0), (0, 0))).astype(bf16)
    smask = jnp.pad(span_mask.astype(jnp.int32), ((0, 0), (0, ps)), constant_values=1)
    wmask = jnp.pad(word_masks.astype(jnp.int32), ((0, 0), (0, ps), (0, 0)), constant_values=1)

    # One bf16 context slab (word contexts flat, then span contexts): single DMA stream
    # and a single fused combine matmul in the kernel.
    ctx = jnp.concatenate([wctx.reshape(B, SW, D), sctx], axis=1)            # (B, SW+Sp, D)
    # Merged additive mask bias (word part, then span part).
    bias = jnp.concatenate([wmask.reshape(B, SW), smask], axis=1).astype(f32) * _NEG
    bias = bias.reshape(B, 1, SW + Sp)

    # PyTorch Linear(2D, D).weight is (D, 2D); y = q @ W[:, :D].T + c @ W[:, D:].T + b.
    # Pack both query halves into one (D, 2D) RHS (single query-projection matmul) and
    # both context halves into one (2D, D) slab. bf16 MXU fast path, f32 accumulation.
    wq = jnp.concatenate([params["w_s"][:, :D].T, params["w_w"][:, :D].T], axis=1).astype(bf16)
    wc = jnp.concatenate([params["w_s"][:, D:].T, params["w_w"][:, D:].T], axis=0).astype(bf16)
    vecs = jnp.stack([params["b_s"], params["sw_s"],
                      params["b_w"], params["sw_w"]]).astype(f32)            # (4, D)

    # Segment matrix (word -> owning span). Used for both the per-span denominators and
    # the span->word expansion; the transposed copy (segT) is no longer needed.
    seg = (jnp.arange(SW) // W == jnp.arange(Sp)[:, None]).astype(bf16)      # (Sp, SW)

    Bt = _pick_batch_block(B, Q, SW + Sp, D)
    grid = (B // Bt,)
    CW = _pick_chunk_words(Sp, W, Bt, Q, D)

    # Explicit scoped-VMEM limit: double-buffered blocks + scratch + live intermediates,
    # clamped to [16 MiB, 64 MiB] (64 MiB == v7x physical VMEM per TensorCore).
    blk_in = (Bt * Q * D * 2 + Bt * (SW + Sp) * D * 2 + Bt * (SW + Sp) * 4
              + 2 * D * D * 2 + 2 * D * D * 2 + 4 * D * 4 + Sp * SW * 2)
    blk_out = Bt * Q * D * 4
    scratch_b = Bt * Q * SW * 4
    live = Bt * Q * CW * D * 4 + Bt * Q * Sp * D * 4 + 4 * Bt * Q * (SW + Sp) * 4
    vmem_limit = int(min(64 << 20, max(16 << 20, 2 * (blk_in + blk_out) + scratch_b + 2 * live)))

    grid_spec = pltpu.PrefetchScalarGridSpec(
        num_scalar_prefetch=0,
        grid=grid,
        in_specs=[
            pl.BlockSpec((Bt, Q, D), lambda b: (b, 0, 0)),            # query (bf16)
            pl.BlockSpec((Bt, SW + Sp, D), lambda b: (b, 0, 0)),      # context slab (bf16)
            pl.BlockSpec((Bt, 1, SW + Sp), lambda b: (b, 0, 0)),      # additive mask bias (f32)
            pl.BlockSpec((D, 2 * D), lambda b: (0, 0)),               # packed query-proj weights
            pl.BlockSpec((2 * D, D), lambda b: (0, 0)),               # packed context-proj weights
            pl.BlockSpec((4, D), lambda b: (0, 0)),                   # b_s / sw_s / b_w / sw_w
            pl.BlockSpec((Sp, SW), lambda b: (0, 0)),                 # segment matrix
        ],
        out_specs=pl.BlockSpec((Bt, Q, D), lambda b: (b, 0, 0)),
        scratch_shapes=[pltpu.VMEM((Bt, Q, SW), jnp.float32)],        # flat word scores
    )
    # TODO(synk): once the target jax version is pinned, mark the grid-invariant inputs
    # (weight slabs, vecs, seg) with pipeline_mode=pl.Buffered(1) to drop their second buffer.
    return pl.pallas_call(
        functools.partial(_hier_attn_kernel, chunk_words=CW),
        out_shape=jax.ShapeDtypeStruct((B, Q, D), jnp.float32),
        grid_spec=grid_spec,
        compiler_params=pltpu.CompilerParams(
            dimension_semantics=("parallel",),
            vmem_limit_bytes=vmem_limit),
    )(query.astype(bf16), ctx, bias, wq, wc, vecs, seg)


# ---------------------------- pure-JAX reference (mirrors PyTorch) ----------------------------
def _ref_attention(query, context, w, b, sw, mask, mix):
    hp = jax.lax.Precision.HIGHEST
    B, Q, D = query.shape
    C = context.shape[1]
    qq = jnp.broadcast_to(query[:, :, None, :], (B, Q, C, D))
    cc = jnp.broadcast_to(context[:, None, :, :], (B, Q, C, D))
    h = jnp.concatenate([qq, cc], axis=-1)                              # (B, Q, C, 2D)
    h = jnp.einsum("bqcd,ed->bqce", h, w, precision=hp) + b
    h = jnp.where(h >= 0, h, 0.01 * h)                                  # leaky_relu
    score = jnp.einsum("bqcd,d->bqc", h, sw, precision=hp)
    score = jnp.where(mask[:, None, :] == 1, -jnp.inf, score)
    attn = jax.nn.softmax(score, axis=-1)
    out = jnp.einsum("bqc,bcd->bqd", attn, context, precision=hp) if mix else None
    return out, attn


def _reference(query, span_context, word_contexts, span_mask, word_masks, p):
    hp = jax.lax.Precision.HIGHEST
    S = span_context.shape[1]
    _, span_attn = _ref_attention(query, span_context, p["w_s"], p["b_s"], p["sw_s"],
                                  span_mask, mix=False)
    word_outs = []
    for s in range(S):
        wo, _ = _ref_attention(query, word_contexts[:, s], p["w_w"], p["b_w"], p["sw_w"],
                               word_masks[:, s], mix=True)
        word_outs.append(wo[:, :, None, :])
    word_output = jnp.concatenate(word_outs, axis=2)                    # (B, Q, S, D)
    comb = span_context[:, None, :, :] + word_output
    return jnp.einsum("bqs,bqsd->bqd", span_attn, comb, precision=hp)


if __name__ == "__main__":
    B, Q, S, W, D = 2, 8, 5, 6, 32
    key = jax.random.PRNGKey(0)
    ks = jax.random.split(key, 10)

    # Deterministic parameters. PyTorch nn.Linear(2*dim, dim): weight (D, 2D), bias (D);
    # nn.Linear(dim, 1): weight (1, D).
    params = {
        "w_s": 0.1 * jax.random.normal(ks[0], (D, 2 * D), jnp.float32),
        "b_s": 0.1 * jax.random.normal(ks[1], (D,), jnp.float32),
        "sw_s": 0.1 * jax.random.normal(ks[2], (D,), jnp.float32),
        "w_w": 0.1 * jax.random.normal(ks[3], (D, 2 * D), jnp.float32),
        "b_w": 0.1 * jax.random.normal(ks[4], (D,), jnp.float32),
        "sw_w": 0.1 * jax.random.normal(ks[5], (D,), jnp.float32),
    }
    # NOTE: the score-layer bias (nn.Linear(dim, 1).bias) adds a single constant to every
    # softmax row and therefore cannot affect any output of this module; it is omitted.

    query = jax.random.normal(ks[6], (B, Q, D), jnp.float32)
    span_context = jax.random.normal(ks[7], (B, S, D), jnp.float32)
    # word_contexts list (length S of (B, W, D)) is stacked along axis 1
    word_contexts = jax.random.normal(ks[8], (B, S, W, D), jnp.float32)
    mk1, mk2 = jax.random.split(ks[9])
    span_mask = (jax.random.uniform(mk1, (B, S)) < 0.3).astype(jnp.int32)
    span_mask = span_mask.at[:, 0].set(0)        # keep >=1 unmasked span per row
    word_masks = (jax.random.uniform(mk2, (B, S, W)) < 0.3).astype(jnp.int32)
    word_masks = word_masks.at[:, :, 0].set(0)   # keep >=1 unmasked word per span

    out = hierarchical_attention(query, span_context, word_contexts, span_mask, word_masks, params)
    out = jax.block_until_ready(out)

    ref = _reference(query, span_context, word_contexts, span_mask, word_masks, params)
    # Tolerance sized for the bf16 MXU/DMA fast path (f32 accumulation); the pure-f32
    # variant of this kernel matches the reference to ~1e-5.
    if not jnp.allclose(out, ref, atol=4e-2, rtol=4e-2):
        raise AssertionError(f"kernel mismatch, max abs err = {jnp.max(jnp.abs(out - ref))}")
    print("KERNEL_OK")
</pallas_src>

<mosaic_0001>
module attributes {stable_mosaic.version = 11 : i64} {
  func.func @_hier_attn_kernel(%arg0: i32, %arg1: memref<1x8x32xbf16, #tpu.memory_space<vmem>>, %arg2: memref<1x56x32xbf16, #tpu.memory_space<vmem>>, %arg3: memref<1x1x56xf32, #tpu.memory_space<vmem>>, %arg4: memref<32x64xbf16, #tpu.memory_space<vmem>>, %arg5: memref<64x32xbf16, #tpu.memory_space<vmem>>, %arg6: memref<4x32xf32, #tpu.memory_space<vmem>>, %arg7: memref<8x48xbf16, #tpu.memory_space<vmem>>, %arg8: memref<1x8x32xf32, #tpu.memory_space<vmem>>, %arg9: memref<1x8x48xf32, #tpu.memory_space<vmem>>) attributes {dimension_semantics = [#tpu.dimension_semantics<parallel>], iteration_bounds = array<i64: 2>, scalar_prefetch = 0 : i64, scratch_operands = 1 : i64, tpu.core_type = #tpu.core_type<tc>, window_params = [{transform_indices = @transform_0, window_bounds = array<i64: 1, 8, 32>}, {transform_indices = @transform_1, window_bounds = array<i64: 1, 56, 32>}, {transform_indices = @transform_2, window_bounds = array<i64: 1, 1, 56>}, {pipeline_mode = #tpu.pipeline_mode<synchronous>, transform_indices = @transform_3, window_bounds = array<i64: 32, 64>}, {pipeline_mode = #tpu.pipeline_mode<synchronous>, transform_indices = @transform_4, window_bounds = array<i64: 64, 32>}, {pipeline_mode = #tpu.pipeline_mode<synchronous>, transform_indices = @transform_5, window_bounds = array<i64: 4, 32>}, {pipeline_mode = #tpu.pipeline_mode<synchronous>, transform_indices = @transform_6, window_bounds = array<i64: 8, 48>}, {transform_indices = @transform_7, window_bounds = array<i64: 1, 8, 32>}]} {
    %c0 = arith.constant 0 : index
    %c0_0 = arith.constant 0 : index
    %0 = vector.load %arg4[%c0, %c0_0] : memref<32x64xbf16, #tpu.memory_space<vmem>>, vector<32x64xbf16>
    %c0_1 = arith.constant 0 : index
    %c0_2 = arith.constant 0 : index
    %1 = vector.load %arg5[%c0_1, %c0_2] : memref<64x32xbf16, #tpu.memory_space<vmem>>, vector<32x32xbf16>
    %c32 = arith.constant 32 : index
    %c0_3 = arith.constant 0 : index
    %2 = vector.load %arg5[%c32, %c0_3] : memref<64x32xbf16, #tpu.memory_space<vmem>>, vector<32x32xbf16>
    %c0_4 = arith.constant 0 : index
    %c0_5 = arith.constant 0 : index
    %3 = vector.load %arg6[%c0_4, %c0_5] : memref<4x32xf32, #tpu.memory_space<vmem>>, vector<1x32xf32>
    %c1 = arith.constant 1 : index
    %c0_6 = arith.constant 0 : index
    %4 = vector.load %arg6[%c1, %c0_6] : memref<4x32xf32, #tpu.memory_space<vmem>>, vector<1x32xf32>
    %c2 = arith.constant 2 : index
    %c0_7 = arith.constant 0 : index
    %5 = vector.load %arg6[%c2, %c0_7] : memref<4x32xf32, #tpu.memory_space<vmem>>, vector<1x32xf32>
    %c3 = arith.constant 3 : index
    %c0_8 = arith.constant 0 : index
    %6 = vector.load %arg6[%c3, %c0_8] : memref<4x32xf32, #tpu.memory_space<vmem>>, vector<1x32xf32>
    %c0_9 = arith.constant 0 : index
    %c0_10 = arith.constant 0 : index
    %7 = vector.load %arg7[%c0_9, %c0_10] : memref<8x48xbf16, #tpu.memory_space<vmem>>, vector<8x48xbf16>
    %c0_11 = arith.constant 0 : index
    %c0_12 = arith.constant 0 : index
    %c0_13 = arith.constant 0 : index
    %8 = vector.load %arg3[%c0_11, %c0_12, %c0_13] : memref<1x1x56xf32, #tpu.memory_space<vmem>>, vector<1x1x56xf32>
    %9 = vector.extract_strided_slice %8 {offsets = [0, 0, 0], sizes = [1, 1, 48], strides = [1, 1, 1]} : vector<1x1x56xf32> to vector<1x1x48xf32>
    %10 = vector.extract_strided_slice %8 {offsets = [0, 0, 48], sizes = [1, 1, 8], strides = [1, 1, 1]} : vector<1x1x56xf32> to vector<1x1x8xf32>
    %c0_14 = arith.constant 0 : index
    %c0_15 = arith.constant 0 : index
    %c0_16 = arith.constant 0 : index
    %11 = vector.load %arg1[%c0_14, %c0_15, %c0_16] : memref<1x8x32xbf16, #tpu.memory_space<vmem>>, vector<1x8x32xbf16>
    %12 = vector.shape_cast %11 : vector<1x8x32xbf16> to vector<8x32xbf16>
    %cst = arith.constant dense<0.000000e+00> : vector<8x64xf32>
    %13 = tpu.matmul %12, %0, %cst {dimension_numbers = #tpu.dot_dimension_numbers<[1], [0], [0], [1], [0, 0, 1, 1], [], []>} : vector<8x32xbf16>, vector<32x64xbf16>, vector<8x64xf32> -> vector<8x64xf32>
    %14 = vector.extract_strided_slice %13 {offsets = [0, 0], sizes = [8, 32], strides = [1, 1]} : vector<8x64xf32> to vector<8x32xf32>
    %15 = vector.broadcast %3 : vector<1x32xf32> to vector<8x32xf32>
    %16 = arith.addf %14, %15 : vector<8x32xf32>
    %17 = vector.shape_cast %16 : vector<8x32xf32> to vector<1x8x32xf32>
    %18 = vector.extract_strided_slice %13 {offsets = [0, 32], sizes = [8, 32], strides = [1, 1]} : vector<8x64xf32> to vector<8x32xf32>
    %19 = vector.broadcast %5 : vector<1x32xf32> to vector<8x32xf32>
    %20 = arith.addf %18, %19 : vector<8x32xf32>
    %21 = vector.shape_cast %20 : vector<8x32xf32> to vector<1x8x32xf32>
    %c0_17 = arith.constant 0 : index
    %c48 = arith.constant 48 : index
    %c0_18 = arith.constant 0 : index
    %22 = vector.load %arg2[%c0_17, %c48, %c0_18] : memref<1x56x32xbf16, #tpu.memory_space<vmem>>, vector<1x8x32xbf16>
    %23 = vector.shape_cast %22 : vector<1x8x32xbf16> to vector<8x32xbf16>
    %cst_19 = arith.constant dense<0.000000e+00> : vector<8x32xf32>
    %24 = tpu.matmul %23, %1, %cst_19 {dimension_numbers = #tpu.dot_dimension_numbers<[1], [0], [0], [1], [0, 0, 1, 1], [], []>} : vector<8x32xbf16>, vector<32x32xbf16>, vector<8x32xf32> -> vector<8x32xf32>
    %25 = vector.shape_cast %24 : vector<8x32xf32> to vector<1x8x32xf32>
    %26 = vector.shape_cast %17 : vector<1x8x32xf32> to vector<1x8x1x32xf32>
    %27 = vector.shape_cast %25 : vector<1x8x32xf32> to vector<1x1x8x32xf32>
    %28 = vector.broadcast %26 : vector<1x8x1x32xf32> to vector<1x8x8x32xf32>
    %29 = vector.broadcast %27 : vector<1x1x8x32xf32> to vector<1x8x8x32xf32>
    %30 = arith.addf %28, %29 : vector<1x8x8x32xf32>
    %cst_20 = arith.constant 0.000000e+00 : f32
    %31 = vector.broadcast %cst_20 : f32 to vector<1x8x8x32xf32>
    %32 = arith.cmpf oge, %30, %31 : vector<1x8x8x32xf32>
    %cst_21 = arith.constant 0.00999999977 : f32
    %33 = vector.broadcast %cst_21 : f32 to vector<1x8x8x32xf32>
    %34 = arith.mulf %33, %30 : vector<1x8x8x32xf32>
    %35 = arith.select %32, %30, %34 : vector<1x8x8x32xi1>, vector<1x8x8x32xf32>
    %36 = vector.shape_cast %4 : vector<1x32xf32> to vector<1x1x1x32xf32>
    %37 = vector.broadcast %36 : vector<1x1x1x32xf32> to vector<1x8x8x32xf32>
    %38 = arith.mulf %35, %37 : vector<1x8x8x32xf32>
    %cst_22 = arith.constant dense<0.000000e+00> : vector<1x8x8xf32>
    %39 = vector.multi_reduction <add>, %38, %cst_22 [3] : vector<1x8x8x32xf32> to vector<1x8x8xf32>
    %40 = vector.broadcast %10 : vector<1x1x8xf32> to vector<1x8x8xf32>
    %41 = arith.addf %39, %40 : vector<1x8x8xf32>
    %cst_23 = arith.constant dense<0xFF800000> : vector<1x8xf32>
    %42 = vector.multi_reduction <maximumf>, %41, %cst_23 [2] : vector<1x8x8xf32> to vector<1x8xf32>
    %43 = vector.shape_cast %42 : vector<1x8xf32> to vector<1x8x1xf32>
    %44 = vector.broadcast %43 : vector<1x8x1xf32> to vector<1x8x8xf32>
    %45 = arith.subf %41, %44 : vector<1x8x8xf32>
    %46 = math.exp %45 : vector<1x8x8xf32>
    %cst_24 = arith.constant dense<0.000000e+00> : vector<1x8xf32>
    %47 = vector.multi_reduction <add>, %46, %cst_24 [2] : vector<1x8x8xf32> to vector<1x8xf32>
    %48 = vector.shape_cast %47 : vector<1x8xf32> to vector<1x8x1xf32>
    %49 = tpu.reciprocal %48 {approx = true} : vector<1x8x1xf32> -> vector<1x8x1xf32>
    %50 = vector.broadcast %49 : vector<1x8x1xf32> to vector<1x8x8xf32>
    %51 = arith.mulf %46, %50 : vector<1x8x8xf32>
    %c0_25 = arith.constant 0 : index
    %c0_26 = arith.constant 0 : index
    %c0_27 = arith.constant 0 : index
    %52 = vector.load %arg2[%c0_25, %c0_26, %c0_27] : memref<1x56x32xbf16, #tpu.memory_space<vmem>>, vector<1x48x32xbf16>
    %53 = vector.shape_cast %52 : vector<1x48x32xbf16> to vector<48x32xbf16>
    %cst_28 = arith.constant dense<0.000000e+00> : vector<48x32xf32>
    %54 = tpu.matmul %53, %2, %cst_28 {dimension_numbers = #tpu.dot_dimension_numbers<[1], [0], [0], [1], [0, 0, 1, 1], [], []>} : vector<48x32xbf16>, vector<32x32xbf16>, vector<48x32xf32> -> vector<48x32xf32>
    %55 = vector.shape_cast %54 : vector<48x32xf32> to vector<1x48x32xf32>
    %56 = vector.shape_cast %21 : vector<1x8x32xf32> to vector<1x8x1x32xf32>
    %57 = vector.shape_cast %55 : vector<1x48x32xf32> to vector<1x1x48x32xf32>
    %58 = vector.broadcast %56 : vector<1x8x1x32xf32> to vector<1x8x48x32xf32>
    %59 = vector.broadcast %57 : vector<1x1x48x32xf32> to vector<1x8x48x32xf32>
    %60 = arith.addf %58, %59 : vector<1x8x48x32xf32>
    %cst_29 = arith.constant 0.000000e+00 : f32
    %61 = vector.broadcast %cst_29 : f32 to vector<1x8x48x32xf32>
    %62 = arith.cmpf oge, %60, %61 : vector<1x8x48x32xf32>
    %cst_30 = arith.constant 0.00999999977 : f32
    %63 = vector.broadcast %cst_30 : f32 to vector<1x8x48x32xf32>
    %64 = arith.mulf %63, %60 : vector<1x8x48x32xf32>
    %65 = arith.select %62, %60, %64 : vector<1x8x48x32xi1>, vector<1x8x48x32xf32>
    %66 = vector.shape_cast %6 : vector<1x32xf32> to vector<1x1x1x32xf32>
    %67 = vector.broadcast %66 : vector<1x1x1x32xf32> to vector<1x8x48x32xf32>
    %68 = arith.mulf %65, %67 : vector<1x8x48x32xf32>
    %cst_31 = arith.constant dense<0.000000e+00> : vector<1x8x48xf32>
    %69 = vector.multi_reduction <add>, %68, %cst_31 [3] : vector<1x8x48x32xf32> to vector<1x8x48xf32>
    %70 = vector.broadcast %9 : vector<1x1x48xf32> to vector<1x8x48xf32>
    %71 = arith.addf %69, %70 : vector<1x8x48xf32>
    %c0_32 = arith.constant 0 : index
    %c0_33 = arith.constant 0 : index
    %c0_34 = arith.constant 0 : index
    %72 = vector.load %arg9[%c0_32, %c0_33, %c0_34] : memref<1x8x48xf32, #tpu.memory_space<vmem>>, vector<1x8x48xf32>
    tpu.vector_store %arg9[%c0_32, %c0_33, %c0_34], %71 {strides = array<i32>} : memref<1x8x48xf32, #tpu.memory_space<vmem>>, vector<1x8x48xf32>,
    %c0_35 = arith.constant 0 : index
    %c0_36 = arith.constant 0 : index
    %c0_37 = arith.constant 0 : index
    %73 = vector.load %arg9[%c0_35, %c0_36, %c0_37] : memref<1x8x48xf32, #tpu.memory_space<vmem>>, vector<1x8x48xf32>
    %cst_38 = arith.constant dense<0xFF800000> : vector<1x8xf32>
    %74 = vector.multi_reduction <maximumf>, %73, %cst_38 [2] : vector<1x8x48xf32> to vector<1x8xf32>
    %75 = vector.shape_cast %74 : vector<1x8xf32> to vector<1x8x1xf32>
    %76 = vector.broadcast %75 : vector<1x8x1xf32> to vector<1x8x48xf32>
    %77 = arith.subf %73, %76 : vector<1x8x48xf32>
    %78 = math.exp %77 : vector<1x8x48xf32>
    %79 = vector.shape_cast %78 : vector<1x8x48xf32> to vector<8x48xf32>
    %80 = arith.truncf %79 : vector<8x48xf32> to vector<8x48xbf16>
    %cst_39 = arith.constant dense<0.000000e+00> : vector<8x8xf32>
    %81 = tpu.matmul %80, %7, %cst_39 {dimension_numbers = #tpu.dot_dimension_numbers<[1], [1], [0], [0], [0, 0, 1, 0], [], []>} : vector<8x48xbf16>, vector<8x48xbf16>, vector<8x8xf32> -> vector<8x8xf32>
    %82 = vector.shape_cast %51 : vector<1x8x8xf32> to vector<8x8xf32>
    %cst_40 = arith.constant 0.000000e+00 : f32
    %83 = vector.broadcast %cst_40 : f32 to vector<8x8xf32>
    %84 = arith.cmpf ogt, %81, %83 : vector<8x8xf32>
    %85 = tpu.reciprocal %81 {approx = true} : vector<8x8xf32> -> vector<8x8xf32>
    %86 = arith.mulf %82, %85 : vector<8x8xf32>
    %cst_41 = arith.constant 0.000000e+00 : f32
    %87 = vector.broadcast %cst_41 : f32 to vector<8x8xf32>
    %88 = arith.select %84, %86, %87 : vector<8x8xi1>, vector<8x8xf32>
    %89 = arith.truncf %88 : vector<8x8xf32> to vector<8x8xbf16>
    %cst_42 = arith.constant dense<0.000000e+00> : vector<8x48xf32>
    %90 = tpu.matmul %89, %7, %cst_42 {dimension_numbers = #tpu.dot_dimension_numbers<[1], [0], [0], [1], [0, 0, 1, 1], [], []>} : vector<8x8xbf16>, vector<8x48xbf16>, vector<8x48xf32> -> vector<8x48xf32>
    %91 = arith.mulf %79, %90 : vector<8x48xf32>
    %92 = vector.shape_cast %91 : vector<8x48xf32> to vector<1x8x48xf32>
    %93 = tpu.concatenate %92, %51 in 2 : vector<1x8x48xf32>, vector<1x8x8xf32> -> vector<1x8x56xf32>
    %94 = arith.truncf %93 : vector<1x8x56xf32> to vector<1x8x56xbf16>
    %c0_43 = arith.constant 0 : index
    %c0_44 = arith.constant 0 : index
    %c0_45 = arith.constant 0 : index
    %95 = vector.load %arg2[%c0_43, %c0_44, %c0_45] : memref<1x56x32xbf16, #tpu.memory_space<vmem>>, vector<1x56x32xbf16>
    "tpu.trace_start"() <{level = 10 : i32, message = "bqk,bkd->bqd"}> : () -> ()
    %cst_46 = arith.constant dense<0.000000e+00> : vector<1x8x32xf32>
    %96 = tpu.matmul %94, %95, %cst_46 {dimension_numbers = #tpu.dot_dimension_numbers<[2], [1], [1], [2], [0, 0, 0, 1, 1, 2], [0], [0]>} : vector<1x8x56xbf16>, vector<1x56x32xbf16>, vector<1x8x32xf32> -> vector<1x8x32xf32>
    "tpu.trace_stop"() : () -> ()
    %c0_47 = arith.constant 0 : index
    %c0_48 = arith.constant 0 : index
    %c0_49 = arith.constant 0 : index
    %97 = vector.load %arg8[%c0_47, %c0_48, %c0_49] : memref<1x8x32xf32, #tpu.memory_space<vmem>>, vector<1x8x32xf32>
    tpu.vector_store %arg8[%c0_47, %c0_48, %c0_49], %96 {strides = array<i32>} : memref<1x8x32xf32, #tpu.memory_space<vmem>>, vector<1x8x32xf32>,
    return
  }
  func.func @transform_0(%arg0: i32) -> (i32, i32, i32) {
    %c0_i32 = arith.constant 0 : i32
    %c0_i32_0 = arith.constant 0 : i32
    %c0_i32_1 = arith.constant 0 : i32
    return %arg0, %c0_i32, %c0_i32_0 : i32, i32, i32
  }
  func.func @transform_1(%arg0: i32) -> (i32, i32, i32) {
    %c0_i32 = arith.constant 0 : i32
    %c0_i32_0 = arith.constant 0 : i32
    %c0_i32_1 = arith.constant 0 : i32
    return %arg0, %c0_i32, %c0_i32_0 : i32, i32, i32
  }
  func.func @transform_2(%arg0: i32) -> (i32, i32, i32) {
    %c0_i32 = arith.constant 0 : i32
    %c0_i32_0 = arith.constant 0 : i32
    %c0_i32_1 = arith.constant 0 : i32
    return %arg0, %c0_i32, %c0_i32_0 : i32, i32, i32
  }
  func.func @transform_3(%arg0: i32) -> (i32, i32) {
    %c0_i32 = arith.constant 0 : i32
    %c0_i32_0 = arith.constant 0 : i32
    %c0_i32_1 = arith.constant 0 : i32
    return %c0_i32, %c0_i32_0 : i32, i32
  }
  func.func @transform_4(%arg0: i32) -> (i32, i32) {
    %c0_i32 = arith.constant 0 : i32
    %c0_i32_0 = arith.constant 0 : i32
    %c0_i32_1 = arith.constant 0 : i32
    return %c0_i32, %c0_i32_0 : i32, i32
  }
  func.func @transform_5(%arg0: i32) -> (i32, i32) {
    %c0_i32 = arith.constant 0 : i32
    %c0_i32_0 = arith.constant 0 : i32
    %c0_i32_1 = arith.constant 0 : i32
    return %c0_i32, %c0_i32_0 : i32, i32
  }
  func.func @transform_6(%arg0: i32) -> (i32, i32) {
    %c0_i32 = arith.constant 0 : i32
    %c0_i32_0 = arith.constant 0 : i32
    %c0_i32_1 = arith.constant 0 : i32
    return %c0_i32, %c0_i32_0 : i32, i32
  }
  func.func @transform_7(%arg0: i32) -> (i32, i32, i32) {
    %c0_i32 = arith.constant 0 : i32
    %c0_i32_0 = arith.constant 0 : i32
    %c0_i32_1 = arith.constant 0 : i32
    return %arg0, %c0_i32, %c0_i32_0 : i32, i32, i32
  }
}

</mosaic_0001>

<llo_original>
// kernel: tpu_custom_call.1
$region0: #{tpu_custom_call.1}
  #allocation0 [shape = 'u32[]', space=smem, size = 0x4, offset = 0x4, fixed_abs, tag = 'smem constant byte address 0x4 - core index']
  #allocation1 [shape = 'u32[144,128]{1,0:T(1,128)}', space=vmem, size = 0x12000, scoped, tag = 'internal scratch']
  #allocation2 [shape = 'f32[1,8,48]{2,1,0:T(8,128)}', space=vmem, size = 0x1000, scoped, tag = 'scratch operand']
  %s0 = inlined_call_operand.vmem [shape: bf16[2,8,32], index: 0, kind: input, shape index: {}]
  %s1 = inlined_call_operand.vmem [shape: bf16[2,56,32], index: 1, kind: input, shape index: {}]
  %s2 = inlined_call_operand.vmem [shape: f32[2,1,56], index: 2, kind: input, shape index: {}]
  %s3 = inlined_call_operand.vmem [shape: bf16[32,64], index: 3, kind: input, shape index: {}]
  %s4 = inlined_call_operand.vmem [shape: bf16[64,32], index: 4, kind: input, shape index: {}]
  %s5 = inlined_call_operand.vmem [shape: f32[4,32], index: 5, kind: input, shape index: {}]
  %s6 = inlined_call_operand.vmem [shape: bf16[8,48], index: 6, kind: input, shape index: {}]
  %s7 = inlined_call_operand.hbm [shape: f32[2,8,32], index: 7, kind: output, shape index: {}]
  %s8 = sld [smem:[#allocation0]]
  $region61: #{tpu_custom_call.1} parent=0
    _
  %s10 = ssub.s32 1, %s8
  %s11 = scalar_select 0, %s10, %s8
  $region1: #{tpu_custom_call.1} parent=0
    #allocation3 [shape = 'u8[8192]{0}', space=vmem, size = 0x2000, scoped, tag = 'output window, operand 0']
    #allocation4 [shape = 's32[2]{0}', space=sflag, size = 0x8, scoped, tag = 'scoped memory for tpu_custom_call.1']
    %12 = vsyncpa [#allocation4], 0
    %s13 = scalar_lea.sflag [#allocation4], 1
    %14 = vsyncpa %s13, 0
    loop: start=0, step=1, limit=4
    $region2: #{tpu_custom_call.1} parent=1 // loop_pre_header
      _
    $region3: #{tpu_custom_call.1} parent=1 // loop_header
      %s16 = sphi 0, %s20
      %p17 = scmp.ge.s32.totalorder %s16, 4
      %s26 = sphi 0, %s28
      %s29 = sphi 0, %s26
      %s30 = sphi 0, %s29
      %s46 = sphi 0, %s30
      %s52 = sphi 0, %s54
      %s55 = sphi 0, %s52
      %s56 = sphi 0, %s55
      %s72 = sphi 0, %s56
      %s78 = sphi 0, %s80
      %s81 = sphi 0, %s78
      %s82 = sphi 0, %s81
      %s98 = sphi 0, %s82
      %s102 = sphi 0, %s102
      %s104 = sphi 0, %s102
      %s105 = sphi 0, %s104
      %s119 = sphi 0, %s105
      %s123 = sphi 0, %s123
      %s125 = sphi 0, %s123
      %s126 = sphi 0, %s125
      %s140 = sphi 0, %s126
      %s144 = sphi 0, %s144
      %s146 = sphi 0, %s144
      %s147 = sphi 0, %s146
      %s161 = sphi 0, %s147
      %s165 = sphi 0, %s165
      %s167 = sphi 0, %s165
      %s168 = sphi 0, %s167
      %s182 = sphi 0, %s168
      %s188 = sphi 0, %s190
      %s191 = sphi 0, %s188
      %s192 = sphi 0, %s191
      %s208 = sphi 0, %s192
    $region4: #{tpu_custom_call.1} parent=1 // loop_header_branch
      %19 = sbr.rel (%p17) target = $region8
    $region5: #{tpu_custom_call.1} parent=1 // loop_body
      %s21 = ssub.s32 %s16, 1
      %s22 = ssub.s32 %s16, 2
      %s23 = sadd.s32 %s16, 1
      %s24 = ssub.s32 %s16, %s23
      %p25 = scmp.eq.s32.totalorder %s24, 0
      %s27 = sadd.s32 %s26, 1
      %s28 = scalar_select %p25, %s26, %s27
      %p31 = pneg %p25
      %p32 = scmp.eq.s32.totalorder %s16, 1
      %p33 = por %p31, %p32
      %p34 = scmp.ne.s32.totalorder %s26, %s29
      %p35 = scmp.eq.s32.totalorder %s16, 0
      %p36 = por %p34, %p35
      %p37 = scmp.ne.s32.totalorder %s26, %s29
      %p38 = scmp.eq.s32.totalorder %s21, 1
      %p39 = por %p37, %p38
      %p40 = scmp.ne.s32.totalorder %s29, %s30
      %p41 = scmp.eq.s32.totalorder %s21, 0
      %p42 = por %p40, %p41
      %p43 = scmp.ne.s32.totalorder %s29, %s30
      %p44 = scmp.eq.s32.totalorder %s22, 1
      %p45 = por %p43, %p44
      %p47 = scmp.ne.s32.totalorder %s30, %s46
      %p48 = scmp.eq.s32.totalorder %s22, 0
      %p49 = por %p47, %p48
      %s50 = ssub.s32 %s16, %s23
      %p51 = scmp.eq.s32.totalorder %s50, 0
      %s53 = sadd.s32 %s52, 1
      %s54 = scalar_select %p51, %s52, %s53
      %p57 = pneg %p51
      %p58 = scmp.eq.s32.totalorder %s16, 1
      %p59 = por %p57, %p58
      %p60 = scmp.ne.s32.totalorder %s52, %s55
      %p61 = scmp.eq.s32.totalorder %s16, 0
      %p62 = por %p60, %p61
      %p63 = scmp.ne.s32.totalorder %s52, %s55
      %p64 = scmp.eq.s32.totalorder %s21, 1
      %p65 = por %p63, %p64
      %p66 = scmp.ne.s32.totalorder %s55, %s56
      %p67 = scmp.eq.s32.totalorder %s21, 0
      %p68 = por %p66, %p67
      %p69 = scmp.ne.s32.totalorder %s55, %s56
      %p70 = scmp.eq.s32.totalorder %s22, 1
      %p71 = por %p69, %p70
      %p73 = scmp.ne.s32.totalorder %s56, %s72
      %p74 = scmp.eq.s32.totalorder %s22, 0
      %p75 = por %p73, %p74
      %s76 = ssub.s32 %s16, %s23
      %p77 = scmp.eq.s32.totalorder %s76, 0
      %s79 = sadd.s32 %s78, 1
      %s80 = scalar_select %p77, %s78, %s79
      %p83 = pneg %p77
      %p84 = scmp.eq.s32.totalorder %s16, 1
      %p85 = por %p83, %p84
      %p86 = scmp.ne.s32.totalorder %s78, %s81
      %p87 = scmp.eq.s32.totalorder %s16, 0
      %p88 = por %p86, %p87
      %p89 = scmp.ne.s32.totalorder %s78, %s81
      %p90 = scmp.eq.s32.totalorder %s21, 1
      %p91 = por %p89, %p90
      %p92 = scmp.ne.s32.totalorder %s81, %s82
      %p93 = scmp.eq.s32.totalorder %s21, 0
      %p94 = por %p92, %p93
      %p95 = scmp.ne.s32.totalorder %s81, %s82
      %p96 = scmp.eq.s32.totalorder %s22, 1
      %p97 = por %p95, %p96
      %p99 = scmp.ne.s32.totalorder %s82, %s98
      %p100 = scmp.eq.s32.totalorder %s22, 0
      %p101 = por %p99, %p100
      %s103 = sadd.s32 %s102, 1
      %p106 = scmp.eq.s32.totalorder %s16, 1
      %p107 = scmp.ne.s32.totalorder %s102, %s104
      %p108 = scmp.eq.s32.totalorder %s16, 0
      %p109 = por %p107, %p108
      %p110 = scmp.ne.s32.totalorder %s102, %s104
      %p111 = scmp.eq.s32.totalorder %s21, 1
      %p112 = por %p110, %p111
      %p113 = scmp.ne.s32.totalorder %s104, %s105
      %p114 = scmp.eq.s32.totalorder %s21, 0
      %p115 = por %p113, %p114
      %p116 = scmp.ne.s32.totalorder %s104, %s105
      %p117 = scmp.eq.s32.totalorder %s22, 1
      %p118 = por %p116, %p117
      %p120 = scmp.ne.s32.totalorder %s105, %s119
      %p121 = scmp.eq.s32.totalorder %s22, 0
      %p122 = por %p120, %p121
      %s124 = sadd.s32 %s123, 1
      %p127 = scmp.eq.s32.totalorder %s16, 1
      %p128 = scmp.ne.s32.totalorder %s123, %s125
      %p129 = scmp.eq.s32.totalorder %s16, 0
      %p130 = por %p128, %p129
      %p131 = scmp.ne.s32.totalorder %s123, %s125
      %p132 = scmp.eq.s32.totalorder %s21, 1
      %p133 = por %p131, %p132
      %p134 = scmp.ne.s32.totalorder %s125, %s126
      %p135 = scmp.eq.s32.totalorder %s21, 0
      %p136 = por %p134, %p135
      %p137 = scmp.ne.s32.totalorder %s125, %s126
      %p138 = scmp.eq.s32.totalorder %s22, 1
      %p139 = por %p137, %p138
      %p141 = scmp.ne.s32.totalorder %s126, %s140
      %p142 = scmp.eq.s32.totalorder %s22, 0
      %p143 = por %p141, %p142
      %s145 = sadd.s32 %s144, 1
      %p148 = scmp.eq.s32.totalorder %s16, 1
      %p149 = scmp.ne.s32.totalorder %s144, %s146
      %p150 = scmp.eq.s32.totalorder %s16, 0
      %p151 = por %p149, %p150
      %p152 = scmp.ne.s32.totalorder %s144, %s146
      %p153 = scmp.eq.s32.totalorder %s21, 1
      %p154 = por %p152, %p153
      %p155 = scmp.ne.s32.totalorder %s146, %s147
      %p156 = scmp.eq.s32.totalorder %s21, 0
      %p157 = por %p155, %p156
      %p158 = scmp.ne.s32.totalorder %s146, %s147
      %p159 = scmp.eq.s32.totalorder %s22, 1
      %p160 = por %p158, %p159
      %p162 = scmp.ne.s32.totalorder %s147, %s161
      %p163 = scmp.eq.s32.totalorder %s22, 0
      %p164 = por %p162, %p163
      %s166 = sadd.s32 %s165, 1
      %p169 = scmp.eq.s32.totalorder %s16, 1
      %p170 = scmp.ne.s32.totalorder %s165, %s167
      %p171 = scmp.eq.s32.totalorder %s16, 0
      %p172 = por %p170, %p171
      %p173 = scmp.ne.s32.totalorder %s165, %s167
      %p174 = scmp.eq.s32.totalorder %s21, 1
      %p175 = por %p173, %p174
      %p176 = scmp.ne.s32.totalorder %s167, %s168
      %p177 = scmp.eq.s32.totalorder %s21, 0
      %p178 = por %p176, %p177
      %p179 = scmp.ne.s32.totalorder %s167, %s168
      %p180 = scmp.eq.s32.totalorder %s22, 1
      %p181 = por %p179, %p180
      %p183 = scmp.ne.s32.totalorder %s168, %s182
      %p184 = scmp.eq.s32.totalorder %s22, 0
      %p185 = por %p183, %p184
      %s186 = ssub.s32 %s16, %s23
      %p187 = scmp.eq.s32.totalorder %s186, 0
      %s189 = sadd.s32 %s188, 1
      %s190 = scalar_select %p187, %s188, %s189
      %p193 = pneg %p187
      %p194 = scmp.eq.s32.totalorder %s16, 1
      %p195 = por %p193, %p194
      %p196 = scmp.ne.s32.totalorder %s188, %s191
      %p197 = scmp.eq.s32.totalorder %s16, 0
      %p198 = por %p196, %p197
      %p199 = scmp.ne.s32.totalorder %s188, %s191
      %p200 = scmp.eq.s32.totalorder %s21, 1
      %p201 = por %p199, %p200
      %p202 = scmp.ne.s32.totalorder %s191, %s192
      %p203 = scmp.eq.s32.totalorder %s21, 0
      %p204 = por %p202, %p203
      %p205 = scmp.ne.s32.totalorder %s191, %s192
      %p206 = scmp.eq.s32.totalorder %s22, 1
      %p207 = por %p205, %p206
      %p209 = scmp.ne.s32.totalorder %s192, %s208
      %p210 = scmp.eq.s32.totalorder %s22, 0
      %p211 = por %p209, %p210
      %p212 = scmp.le.s32.totalorder 1, %s16
      %p213 = scmp.lt.s32.totalorder %s16, 3
      %p214 = pnand %p212, %p213
      %p215 = pneg %p214
      // Predicated region
      $region9: #{tpu_custom_call.1} parent=5 // pred_check
        _
      $region10: #{tpu_custom_call.1} parent=5 // pred_check_branch
        %217 = sbr.rel (%p214) target = $region12
      $region11: #{tpu_custom_call.1} parent=5 // pred_region
        %s218 = ssub.s32 %s16, 1
        // Predicated region
        $region13: #{tpu_custom_call.1} parent=11 // pred_check
          %p219 = pneg %p115
        $region14: #{tpu_custom_call.1} parent=11 // pred_check_branch
          %221 = sbr.rel (%p219) target = $region16
        $region15: #{tpu_custom_call.1} parent=11 // pred_region
          _
        $region16: #{tpu_custom_call.1} parent=11 // pred_fallthru
          _
        // Predicated region
        $region17: #{tpu_custom_call.1} parent=11 // pred_check
          %p222 = pneg %p136
        $region18: #{tpu_custom_call.1} parent=11 // pred_check_branch
          %224 = sbr.rel (%p222) target = $region20
        $region19: #{tpu_custom_call.1} parent=11 // pred_region
          _
        $region20: #{tpu_custom_call.1} parent=11 // pred_fallthru
          _
        // Predicated region
        $region21: #{tpu_custom_call.1} parent=11 // pred_check
          %p225 = pneg %p157
        $region22: #{tpu_custom_call.1} parent=11 // pred_check_branch
          %227 = sbr.rel (%p225) target = $region24
        $region23: #{tpu_custom_call.1} parent=11 // pred_region
          _
        $region24: #{tpu_custom_call.1} parent=11 // pred_fallthru
          _
        // Predicated region
        $region25: #{tpu_custom_call.1} parent=11 // pred_check
          %p228 = pneg %p178
        $region26: #{tpu_custom_call.1} parent=11 // pred_check_branch
          %230 = sbr.rel (%p228) target = $region28
        $region27: #{tpu_custom_call.1} parent=11 // pred_region
          _
        $region28: #{tpu_custom_call.1} parent=11 // pred_fallthru
          _
      $region12: #{tpu_custom_call.1} parent=5 // pred_fallthru
        _
      %p231 = scmp.lt.s32.totalorder %s16, 2
      // Predicated region
      $region29: #{tpu_custom_call.1} parent=5 // pred_check
        %p232 = pneg %p231
      $region30: #{tpu_custom_call.1} parent=5 // pred_check_branch
        %234 = sbr.rel (%p232) target = $region32
      $region31: #{tpu_custom_call.1} parent=5 // pred_region
        // Predicated region
        $region33: #{tpu_custom_call.1} parent=31 // pred_check
          %p235 = pneg %p36
        $region34: #{tpu_custom_call.1} parent=31 // pred_check_branch
          %237 = sbr.rel (%p235) target = $region36
        $region35: #{tpu_custom_call.1} parent=31 // pred_region
          %p238 = scmp.lt.s32.totalorder %s16, 1
          %s239 = scalar_select %p238, %s16, 1
          %s240 = smul.addr %s239, 4
          %s241 = scalar_lea.vmem %s0, %s240
        $region36: #{tpu_custom_call.1} parent=31 // pred_fallthru
          _
        // Predicated region
        $region37: #{tpu_custom_call.1} parent=31 // pred_check
          %p242 = pneg %p62
        $region38: #{tpu_custom_call.1} parent=31 // pred_check_branch
          %244 = sbr.rel (%p242) target = $region40
        $region39: #{tpu_custom_call.1} parent=31 // pred_region
          %p245 = scmp.lt.s32.totalorder %s16, 1
          %s246 = scalar_select %p245, %s16, 1
          %s247 = smul.addr %s246, 7
          %s248 = smul.addr %s247, 4
          %s249 = scalar_lea.vmem %s1, %s248
        $region40: #{tpu_custom_call.1} parent=31 // pred_fallthru
          _
        // Predicated region
        $region41: #{tpu_custom_call.1} parent=31 // pred_check
          %p250 = pneg %p88
        $region42: #{tpu_custom_call.1} parent=31 // pred_check_branch
          %252 = sbr.rel (%p250) target = $region44
        $region43: #{tpu_custom_call.1} parent=31 // pred_region
          %p253 = scmp.lt.s32.totalorder %s16, 1
          %s254 = scalar_select %p253, %s16, 1
          %s255 = scalar_lea.vmem %s2, %s254
        $region44: #{tpu_custom_call.1} parent=31 // pred_fallthru
          _
      $region32: #{tpu_custom_call.1} parent=5 // pred_fallthru
        _
      %p256 = scmp.le.s32.totalorder 1, %s16
      %p257 = scmp.lt.s32.totalorder %s16, 3
      %p258 = pnand %p256, %p257
      %p259 = pneg %p258
      // Predicated region
      $region45: #{tpu_custom_call.1} parent=5 // pred_check
        _
      $region46: #{tpu_custom_call.1} parent=5 // pred_check_branch
        %261 = sbr.rel (%p258) target = $region48
      $region47: #{tpu_custom_call.1} parent=5 // pred_region
        %s262 = ssub.s32 %s16, 1
        %p263 = scmp.lt.s32.totalorder %s21, 1
        %s264 = scalar_select %p263, %s21, 1
        %s265 = smul.addr %s264, 4
        %s266 = scalar_lea.vmem %s0, %s265
        %p267 = pneg %p42
        %p268 = pneg %p39
        %p269 = scmp.lt.s32.totalorder %s21, 1
        %s270 = scalar_select %p269, %s21, 1
        %s271 = smul.addr %s270, 7
        %s272 = smul.addr %s271, 4
        %s273 = scalar_lea.vmem %s1, %s272
        %p274 = pneg %p68
        %p275 = pneg %p65
        %p276 = scmp.lt.s32.totalorder %s21, 1
        %s277 = scalar_select %p276, %s21, 1
        %s278 = scalar_lea.vmem %s2, %s277
        %p279 = pneg %p94
        %p280 = pneg %p91
        %p281 = pneg %p115
        %p282 = pneg %p112
        %p283 = pneg %p136
        %p284 = pneg %p133
        %p285 = pneg %p157
        %p286 = pneg %p154
        %p287 = pneg %p178
        %p288 = pneg %p175
        %p289 = pneg %p204
        %p290 = pneg %p201
        %s291 = sand.u32 %s191, 1
        %s292 = scalar_lea.sflag [#allocation4], %s291
        %s293 = sand.u32 %s191, 1
        %s294 = smul.addr %s293, 8
        %s295 = scalar_lea.vmem [#allocation3], %s294
        %p296 = scmp.lt.s32.totalorder %s21, 1
        %s297 = scalar_select %p296, %s21, 1
        %s298 = smul.addr %s297, 4
        %s299 = scalar_lea.vmem %s0, %s298
        %p300 = scmp.lt.s32.totalorder %s21, 1
        %s301 = scalar_select %p300, %s21, 1
        %s302 = smul.addr %s301, 7
        %s303 = smul.addr %s302, 4
        %s304 = scalar_lea.vmem %s1, %s303
        %p305 = scmp.lt.s32.totalorder %s21, 1
        %s306 = scalar_select %p305, %s21, 1
        %s307 = scalar_lea.vmem %s2, %s306
        %v309 = vld [vmem:[%s3] sm:$0xf]
        %v310 = vld [vmem:[%s3 + $0x4] sm:$0xf]
        %v311 = vld [vmem:[%s3 + $0x8] sm:$0xf]
        %v312 = vld [vmem:[%s3 + $0xc] sm:$0xf]
        %v313 = vld [vmem:[%s4] sm:$0xf]
        %v314 = vld [vmem:[%s4 + $0x4] sm:$0xf]
        %v315 = vld [vmem:[%s4 + $0x8] sm:$0xf]
        %v316 = vld [vmem:[%s4 + $0xc] sm:$0xf]
        %v317 = vld [vmem:[%s4 + $0x10] sm:$0xf]
        %v318 = vld [vmem:[%s4 + $0x14] sm:$0xf]
        %v319 = vld [vmem:[%s4 + $0x18] sm:$0xf]
        %v320 = vld [vmem:[%s4 + $0x1c] sm:$0xf]
        %v321 = vld [vmem:[%s5] sm:$0x1]
        %v322 = vld [vmem:[%s5 + $0x1] sm:$0x1]
        %v323 = vld [vmem:[%s5 + $0x2] sm:$0x1]
        %v324 = vld [vmem:[%s5 + $0x3] sm:$0x1]
        %v325 = vld [vmem:[%s6] sm:$0xf]
        %v326 = vld [vmem:[%s307] sm:$0x1]
        %v327 = vld [vmem:[%s299] sm:$0xf]
        %v332 = vunpack.c.l.b16 %v309
        %v333 = vunpack.c.l.b16 %v310
        %v334 = vunpack.c.l.b16 %v311
        %v335 = vunpack.c.l.b16 %v312
        %v336 = vpack.c.b16 %v333, %v332
        %v337 = vpack.c.b16 %v335, %v334
        %vm340 = vcmask 261120
        %v342 = vsel %vm340, %v327, 0
        %344 = vmatprep.subr.bf16.mxu0 0
        %345 = vmatpush1.bf16.msra.mxu0 0
        %346 = vmatprep.subr.bf16.mxu0 0
        %347 = vmatpush1.bf16.msra.mxu0 0
        %348 = vmatprep.subr.bf16.mxu0 0
        %349 = vmatpush1.bf16.msra.mxu0 0
        %350 = vmatprep.subr.bf16.mxu0 0
        %351 = vmatpush1.bf16.msra.mxu0 0
        %352 = vmatprep.subr.bf16.mxu0 0
        %353 = vmatpush1.bf16.msra.mxu0 0
        %354 = vmatprep.subr.bf16.mxu0 0
        %355 = vmatpush1.bf16.msra.mxu0 0
        %356 = vmatprep.subr.bf16.mxu0 0
        %357 = vmatpush1.bf16.msra.mxu0 %v337
        %358 = vmatprep.subr.bf16.mxu0 0
        %359 = vmatpush1.bf16.msra.mxu0 %v336
        %360 = vmatprep.subr.bf16.mxu0 0
        %361 = vmatpush2.bf16.msra.mxu0 0
        %362 = vmatprep.subr.bf16.mxu0 0
        %363 = vmatpush2.bf16.msra.mxu0 0
        %364 = vmatprep.subr.bf16.mxu0 0
        %365 = vmatpush2.bf16.msra.mxu0 0
        %366 = vmatprep.subr.bf16.mxu0 0
        %367 = vmatpush2.bf16.msra.mxu0 0
        %368 = vmatprep.subr.bf16.mxu0 0
        %369 = vmatpush2.bf16.msra.mxu0 0
        %370 = vmatprep.subr.bf16.mxu0 0
        %371 = vmatpush2.bf16.msra.mxu0 0
        %372 = vmatprep.subr.bf16.mxu0 0
        %373 = vmatpush2.bf16.msra.mxu0 0
        %374 = vmatprep.subr.bf16.mxu0 0
        %375 = vmatpush2.bf16.msra.mxu0 0
        %376 = vmatprep.mubr.bf16.mxu0 0
        %377 = vmatmul.mubr.bf16.gmra.mxu0 %v342
        %v378 = vpop.f32.mrf.mxu0
        %v379 = vadd.f32 0.0, %v378
        %v380 = vpop.f32.mrf.mxu0
        %v381 = vpop.f32.mrf.mxu0
        %v382 = vpop.f32.mrf.mxu0
        %383 = vdwg.mxu0
        %v384 = vlaneseq
        %v385 = vshrl.u32 %v384, 7
        %v386 = vsub.s32 0, %v385
        %v387 = vrot.slane %v321, %v386
        %v388 = vadd.f32 %v379, %v387
        %v389 = vlaneseq
        %v390 = vshrl.u32 %v389, 7
        %v391 = vsub.s32 0, %v390
        %v392 = vrot.slane %v323, %v391
        %394 = vrot.lane.b32.xlu0 %v392, 32
        %v395 = vpop.permute.xlu0 %394
        %v397 = vadd.f32 %v379, %v395
        %v398 = vld [vmem:[%s304 + $0x18] sm:$0xf]
        %v403 = vunpack.c.l.b16 %v313
        %v404 = vunpack.c.l.b16 %v314
        %v405 = vunpack.c.l.b16 %v315
        %v406 = vunpack.c.l.b16 %v316
        %v407 = vpack.c.b16 %v404, %v403
        %v408 = vpack.c.b16 %v406, %v405
        %v412 = vsel %vm340, %v398, 0
        %414 = vmatprep.subr.bf16.mxu0 0
        %415 = vmatpush1.bf16.msra.mxu0 0
        %416 = vmatprep.subr.bf16.mxu0 0
        %417 = vmatpush1.bf16.msra.mxu0 0
        %418 = vmatprep.subr.bf16.mxu0 0
        %419 = vmatpush1.bf16.msra.mxu0 0
        %420 = vmatprep.subr.bf16.mxu0 0
        %421 = vmatpush1.bf16.msra.mxu0 0
        %422 = vmatprep.subr.bf16.mxu0 0
        %423 = vmatpush1.bf16.msra.mxu0 0
        %424 = vmatprep.subr.bf16.mxu0 0
        %425 = vmatpush1.bf16.msra.mxu0 0
        %426 = vmatprep.subr.bf16.mxu0 0
        %427 = vmatpush1.bf16.msra.mxu0 %v408
        %428 = vmatprep.subr.bf16.mxu0 0
        %429 = vmatpush1.bf16.msra.mxu0 %v407
        %430 = vmatprep.subr.bf16.mxu0 0
        %431 = vmatpush2.bf16.msra.mxu0 0
        %432 = vmatprep.subr.bf16.mxu0 0
        %433 = vmatpush2.bf16.msra.mxu0 0
        %434 = vmatprep.subr.bf16.mxu0 0
        %435 = vmatpush2.bf16.msra.mxu0 0
        %436 = vmatprep.subr.bf16.mxu0 0
        %437 = vmatpush2.bf16.msra.mxu0 0
        %438 = vmatprep.subr.bf16.mxu0 0
        %439 = vmatpush2.bf16.msra.mxu0 0
        %440 = vmatprep.subr.bf16.mxu0 0
        %441 = vmatpush2.bf16.msra.mxu0 0
        %442 = vmatprep.subr.bf16.mxu0 0
        %443 = vmatpush2.bf16.msra.mxu0 0
        %444 = vmatprep.subr.bf16.mxu0 0
        %445 = vmatpush2.bf16.msra.mxu0 0
        %446 = vmatprep.mubr.bf16.mxu0 0
        %447 = vmatmul.mubr.bf16.gmra.mxu0 %v412
        %v448 = vpop.f32.mrf.mxu0
        %v449 = vadd.f32 0.0, %v448
        %v450 = vpop.f32.mrf.mxu0
        %v451 = vpop.f32.mrf.mxu0
        %v452 = vpop.f32.mrf.mxu0
        %453 = vdwg.mxu0
        %v455 = vcombine.high %v388, %v388
        %v457 = vunpack.c.l.s4 1966171168
        %v458 = vunpack.c.0.s8 %v457
        %v459 = vlaneseq
        %v460 = vshrl.u32 %v459, 7
        %v461 = vsub.s32 %v458, %v460
        %v462 = vrot.slane %v388, %v461
        %v464 = vunpack.c.l.s4 1966171168
        %v465 = vunpack.c.0.s8 %v464
        %v466 = vlaneseq
        %v467 = vshrl.u32 %v466, 7
        %v468 = vsub.s32 %v465, %v467
        %v469 = vrot.slane %v455, %v468
        %v470 = vcombine.high %v462, %v462
        %v471 = vcombine.high %v469, %v469
        %v473 = vunpack.c.l.s4 1966171168
        %v474 = vunpack.c.0.s8 %v473
        %v475 = vlaneseq
        %v476 = vshrl.u32 %v475, 7
        %v477 = vsub.s32 %v474, %v476
        %v478 = vrot.slane %v462, %v477
        %v480 = vunpack.c.l.s4 1966171168
        %v481 = vunpack.c.0.s8 %v480
        %v482 = vlaneseq
        %v483 = vshrl.u32 %v482, 7
        %v484 = vsub.s32 %v481, %v483
        %v485 = vrot.slane %v469, %v484
        %v487 = vunpack.c.l.s4 1966171168
        %v488 = vunpack.c.0.s8 %v487
        %v489 = vlaneseq
        %v490 = vshrl.u32 %v489, 7
        %v491 = vsub.s32 %v488, %v490
        %v492 = vrot.slane %v470, %v491
        %v494 = vunpack.c.l.s4 1966171168
        %v495 = vunpack.c.0.s8 %v494
        %v496 = vlaneseq
        %v497 = vshrl.u32 %v496, 7
        %v498 = vsub.s32 %v495, %v497
        %v499 = vrot.slane %v471, %v498
        %v500 = vcombine.high %v478, %v478
        %v501 = vcombine.high %v485, %v485
        %v502 = vcombine.high %v492, %v492
        %v503 = vcombine.high %v499, %v499
        %v504 = vlaneseq
        %v505 = vshrl.u32 %v504, 7
        %v506 = vsub.s32 0, %v505
        %v507 = vrot.slane %v478, %v506
        %v508 = vlaneseq
        %v509 = vshrl.u32 %v508, 7
        %v510 = vsub.s32 0, %v509
        %v511 = vrot.slane %v492, %v510
        %v512 = vlaneseq
        %v513 = vshrl.u32 %v512, 7
        %v514 = vsub.s32 0, %v513
        %v515 = vrot.slane %v500, %v514
        %v516 = vlaneseq
        %v517 = vshrl.u32 %v516, 7
        %v518 = vsub.s32 0, %v517
        %v519 = vrot.slane %v502, %v518
        %v520 = vlaneseq
        %v521 = vshrl.u32 %v520, 7
        %v522 = vsub.s32 0, %v521
        %v523 = vrot.slane %v485, %v522
        %v524 = vlaneseq
        %v525 = vshrl.u32 %v524, 7
        %v526 = vsub.s32 0, %v525
        %v527 = vrot.slane %v499, %v526
        %v528 = vlaneseq
        %v529 = vshrl.u32 %v528, 7
        %v530 = vsub.s32 0, %v529
        %v531 = vrot.slane %v501, %v530
        %v532 = vlaneseq
        %v533 = vshrl.u32 %v532, 7
        %v534 = vsub.s32 0, %v533
        %v535 = vrot.slane %v503, %v534
        %v544 = vadd.f32 %v507, %v449
        %v545 = vadd.f32 %v511, %v449
        %v546 = vadd.f32 %v515, %v449
        %v547 = vadd.f32 %v519, %v449
        %v548 = vadd.f32 %v523, %v449
        %v549 = vadd.f32 %v527, %v449
        %v550 = vadd.f32 %v531, %v449
        %v551 = vadd.f32 %v535, %v449
        %vm552 = vcmp.ge.f32.partialorder %v544, 0.0
        %vm553 = vcmp.ge.f32.partialorder %v545, 0.0
        %vm554 = vcmp.ge.f32.partialorder %v546, 0.0
        %vm555 = vcmp.ge.f32.partialorder %v547, 0.0
        %vm556 = vcmp.ge.f32.partialorder %v548, 0.0
        %vm557 = vcmp.ge.f32.partialorder %v549, 0.0
        %vm558 = vcmp.ge.f32.partialorder %v550, 0.0
        %vm559 = vcmp.ge.f32.partialorder %v551, 0.0
        %v560 = vmul.f32 %v544, 0.01
        %v561 = vmul.f32 %v545, 0.01
        %v562 = vmul.f32 %v546, 0.01
        %v563 = vmul.f32 %v547, 0.01
        %v564 = vmul.f32 %v548, 0.01
        %v565 = vmul.f32 %v549, 0.01
        %v566 = vmul.f32 %v550, 0.01
        %v567 = vmul.f32 %v551, 0.01
        %v568 = vsel %vm552, %v544, %v560
        %v569 = vsel %vm553, %v545, %v561
        %v570 = vsel %vm554, %v546, %v562
        %v571 = vsel %vm555, %v547, %v563
        %v572 = vsel %vm556, %v548, %v564
        %v573 = vsel %vm557, %v549, %v565
        %v574 = vsel %vm558, %v550, %v566
        %v575 = vsel %vm559, %v551, %v567
        %v576 = vlaneseq
        %v577 = vshrl.u32 %v576, 7
        %v578 = vsub.s32 0, %v577
        %v579 = vrot.slane %v322, %v578
        %v580 = vmul.f32 %v568, %v579
        %v581 = vmul.f32 %v569, %v579
        %v582 = vmul.f32 %v570, %v579
        %v583 = vmul.f32 %v571, %v579
        %v584 = vmul.f32 %v572, %v579
        %v585 = vmul.f32 %v573, %v579
        %v586 = vmul.f32 %v574, %v579
        %v587 = vmul.f32 %v575, %v579
        %v588 = vsel %vm340, %v580, 0.0
        %589 = vadd.xlane.f32.xlu0 %v588
        %v590 = vpop.xlane.xlu0 %589
        %v591 = vsel %vm340, %v581, 0.0
        %592 = vadd.xlane.f32.xlu0 %v591
        %v593 = vpop.xlane.xlu0 %592
        %v594 = vsel %vm340, %v582, 0.0
        %595 = vadd.xlane.f32.xlu0 %v594
        %v596 = vpop.xlane.xlu0 %595
        %v597 = vsel %vm340, %v583, 0.0
        %598 = vadd.xlane.f32.xlu0 %v597
        %v599 = vpop.xlane.xlu0 %598
        %v600 = vsel %vm340, %v584, 0.0
        %601 = vadd.xlane.f32.xlu0 %v600
        %v602 = vpop.xlane.xlu0 %601
        %v603 = vsel %vm340, %v585, 0.0
        %604 = vadd.xlane.f32.xlu0 %v603
        %v605 = vpop.xlane.xlu0 %604
        %v606 = vsel %vm340, %v586, 0.0
        %607 = vadd.xlane.f32.xlu0 %v606
        %v608 = vpop.xlane.xlu0 %607
        %v609 = vsel %vm340, %v587, 0.0
        %610 = vadd.xlane.f32.xlu0 %v609
        %v611 = vpop.xlane.xlu0 %610
        %v613 = vlaneseq
        %v614 = vshrl.u32 %v613, 7
        %v615 = vsub.s32 0, %v614
        %v616 = vrot.slane %v326, %v615
        %s618 = sor.u32 256, 48
        %619 = vbcast.lane.b32.xlu0 %v616, %s618
        %v620 = vpop.permute.xlu0 %619
        %v622 = vadd.f32 %v590, %v620
        %v623 = vadd.f32 %v593, %v620
        %v624 = vadd.f32 %v596, %v620
        %v625 = vadd.f32 %v599, %v620
        %v626 = vadd.f32 %v602, %v620
        %v627 = vadd.f32 %v605, %v620
        %v628 = vadd.f32 %v608, %v620
        %v629 = vadd.f32 %v611, %v620
        %638 = vset.pattern.permute.xlu0 0
        %639 = vperm.xlu0 %638, %v622
        %v640 = vpop.permute.xlu0 %639
        %641 = vset.pattern.permute.xlu0 0
        %642 = vperm.xlu0 %641, %v623
        %v643 = vpop.permute.xlu0 %642
        %644 = vset.pattern.permute.xlu0 0
        %645 = vperm.xlu0 %644, %v624
        %v646 = vpop.permute.xlu0 %645
        %647 = vset.pattern.permute.xlu0 0
        %648 = vperm.xlu0 %647, %v625
        %v649 = vpop.permute.xlu0 %648
        %650 = vset.pattern.permute.xlu0 0
        %651 = vperm.xlu0 %650, %v626
        %v652 = vpop.permute.xlu0 %651
        %653 = vset.pattern.permute.xlu0 0
        %654 = vperm.xlu0 %653, %v627
        %v655 = vpop.permute.xlu0 %654
        %656 = vset.pattern.permute.xlu0 0
        %657 = vperm.xlu0 %656, %v628
        %v658 = vpop.permute.xlu0 %657
        %659 = vset.pattern.permute.xlu0 0
        %660 = vperm.xlu0 %659, %v629
        %v661 = vpop.permute.xlu0 %660
        %v662 = vlaneseq
        %v663 = vand.u32 %v662, 127
        %v664 = vlaneseq
        %v665 = vshrl.u32 %v664, 7
        %v666 = vsub.s32 %v663, %v665
        %v667 = vrot.slane %v640, %v666
        %v668 = vlaneseq
        %v669 = vshrl.u32 %v668, 7
        %v670 = vsub.s32 %v663, %v669
        %v671 = vrot.slane %v643, %v670
        %v672 = vlaneseq
        %v673 = vshrl.u32 %v672, 7
        %v674 = vsub.s32 %v663, %v673
        %v675 = vrot.slane %v646, %v674
        %v676 = vlaneseq
        %v677 = vshrl.u32 %v676, 7
        %v678 = vsub.s32 %v663, %v677
        %v679 = vrot.slane %v649, %v678
        %v680 = vlaneseq
        %v681 = vshrl.u32 %v680, 7
        %v682 = vsub.s32 %v663, %v681
        %v683 = vrot.slane %v652, %v682
        %v684 = vlaneseq
        %v685 = vshrl.u32 %v684, 7
        %v686 = vsub.s32 %v663, %v685
        %v687 = vrot.slane %v655, %v686
        %v688 = vlaneseq
        %v689 = vshrl.u32 %v688, 7
        %v690 = vsub.s32 %v663, %v689
        %v691 = vrot.slane %v658, %v690
        %v692 = vlaneseq
        %v693 = vshrl.u32 %v692, 7
        %v694 = vsub.s32 %v663, %v693
        %v695 = vrot.slane %v661, %v694
        %vm696 = vcmask 1041409
        %v697 = vsel %vm696, %v671, %v667
        %vm698 = vcmask 1042434
        %v699 = vsel %vm698, %v675, %v697
        %vm700 = vcmask 1043459
        %v701 = vsel %vm700, %v679, %v699
        %vm702 = vcmask 1044484
        %v703 = vsel %vm702, %v683, %v701
        %vm704 = vcmask 1045509
        %v705 = vsel %vm704, %v687, %v703
        %vm706 = vcmask 1046534
        %v707 = vsel %vm706, %v691, %v705
        %vm708 = vcmask 1047559
        %v709 = vsel %vm708, %v695, %v707
        %vm711 = vcmask 64512
        %v712 = vsel %vm711, %v709, -inf
        %713 = vmax.xlane.f32.xlu0 %v712
        %v714 = vpop.xlane.xlu0 %713
        %v716 = vlaneseq
        %v717 = vshrl.u32 %v716, 7
        %v718 = vsub.s32 0, %v717
        %v719 = vrot.slane %v714, %v718
        %v720 = vlaneseq
        %v721 = vshrl.u32 %v720, 7
        %v722 = vsub.s32 1, %v721
        %v723 = vrot.slane %v714, %v722
        %v724 = vlaneseq
        %v725 = vshrl.u32 %v724, 7
        %v726 = vsub.s32 2, %v725
        %v727 = vrot.slane %v714, %v726
        %v728 = vlaneseq
        %v729 = vshrl.u32 %v728, 7
        %v730 = vsub.s32 3, %v729
        %v731 = vrot.slane %v714, %v730
        %v732 = vlaneseq
        %v733 = vshrl.u32 %v732, 7
        %v734 = vsub.s32 4, %v733
        %v735 = vrot.slane %v714, %v734
        %v736 = vlaneseq
        %v737 = vshrl.u32 %v736, 7
        %v738 = vsub.s32 5, %v737
        %v739 = vrot.slane %v714, %v738
        %v740 = vlaneseq
        %v741 = vshrl.u32 %v740, 7
        %v742 = vsub.s32 6, %v741
        %v743 = vrot.slane %v714, %v742
        %v744 = vlaneseq
        %v745 = vshrl.u32 %v744, 7
        %v746 = vsub.s32 7, %v745
        %v747 = vrot.slane %v714, %v746
        %v756 = vsub.f32 %v622, %v719
        %v757 = vsub.f32 %v623, %v723
        %v758 = vsub.f32 %v624, %v727
        %v759 = vsub.f32 %v625, %v731
        %v760 = vsub.f32 %v626, %v735
        %v761 = vsub.f32 %v627, %v739
        %v762 = vsub.f32 %v628, %v743
        %v763 = vsub.f32 %v629, %v747
        %v764 = vmul.f32 %v756, 1.442695
        %v765 = vpow.pop %v764
        %v766 = vmul.f32 %v757, 1.442695
        %v767 = vpow.pop %v766
        %v768 = vmul.f32 %v758, 1.442695
        %v769 = vpow.pop %v768
        %v770 = vmul.f32 %v759, 1.442695
        %v771 = vpow.pop %v770
        %v772 = vmul.f32 %v760, 1.442695
        %v773 = vpow.pop %v772
        %v774 = vmul.f32 %v761, 1.442695
        %v775 = vpow.pop %v774
        %v776 = vmul.f32 %v762, 1.442695
        %v777 = vpow.pop %v776
        %v778 = vmul.f32 %v763, 1.442695
        %v779 = vpow.pop %v778
        %788 = vset.pattern.permute.xlu0 0
        %789 = vperm.xlu0 %788, %v765
        %v790 = vpop.permute.xlu0 %789
        %791 = vset.pattern.permute.xlu0 0
        %792 = vperm.xlu0 %791, %v767
        %v793 = vpop.permute.xlu0 %792
        %794 = vset.pattern.permute.xlu0 0
        %795 = vperm.xlu0 %794, %v769
        %v796 = vpop.permute.xlu0 %795
        %797 = vset.pattern.permute.xlu0 0
        %798 = vperm.xlu0 %797, %v771
        %v799 = vpop.permute.xlu0 %798
        %800 = vset.pattern.permute.xlu0 0
        %801 = vperm.xlu0 %800, %v773
        %v802 = vpop.permute.xlu0 %801
        %803 = vset.pattern.permute.xlu0 0
        %804 = vperm.xlu0 %803, %v775
        %v805 = vpop.permute.xlu0 %804
        %806 = vset.pattern.permute.xlu0 0
        %807 = vperm.xlu0 %806, %v777
        %v808 = vpop.permute.xlu0 %807
        %809 = vset.pattern.permute.xlu0 0
        %810 = vperm.xlu0 %809, %v779
        %v811 = vpop.permute.xlu0 %810
        %v812 = vlaneseq
        %v813 = vshrl.u32 %v812, 7
        %v814 = vsub.s32 %v663, %v813
        %v815 = vrot.slane %v790, %v814
        %v816 = vlaneseq
        %v817 = vshrl.u32 %v816, 7
        %v818 = vsub.s32 %v663, %v817
        %v819 = vrot.slane %v793, %v818
        %v820 = vlaneseq
        %v821 = vshrl.u32 %v820, 7
        %v822 = vsub.s32 %v663, %v821
        %v823 = vrot.slane %v796, %v822
        %v824 = vlaneseq
        %v825 = vshrl.u32 %v824, 7
        %v826 = vsub.s32 %v663, %v825
        %v827 = vrot.slane %v799, %v826
        %v828 = vlaneseq
        %v829 = vshrl.u32 %v828, 7
        %v830 = vsub.s32 %v663, %v829
        %v831 = vrot.slane %v802, %v830
        %v832 = vlaneseq
        %v833 = vshrl.u32 %v832, 7
        %v834 = vsub.s32 %v663, %v833
        %v835 = vrot.slane %v805, %v834
        %v836 = vlaneseq
        %v837 = vshrl.u32 %v836, 7
        %v838 = vsub.s32 %v663, %v837
        %v839 = vrot.slane %v808, %v838
        %v840 = vlaneseq
        %v841 = vshrl.u32 %v840, 7
        %v842 = vsub.s32 %v663, %v841
        %v843 = vrot.slane %v811, %v842
        %v844 = vsel %vm696, %v819, %v815
        %v845 = vsel %vm698, %v823, %v844
        %v846 = vsel %vm700, %v827, %v845
        %v847 = vsel %vm702, %v831, %v846
        %v848 = vsel %vm704, %v835, %v847
        %v849 = vsel %vm706, %v839, %v848
        %v850 = vsel %vm708, %v843, %v849
        %v852 = vsel %vm711, %v850, 0.0
        %853 = vadd.xlane.f32.xlu0 %v852
        %v854 = vpop.xlane.xlu0 %853
        %v855 = vrcp.pop %v854
        %v857 = vlaneseq
        %v858 = vshrl.u32 %v857, 7
        %v859 = vsub.s32 0, %v858
        %v860 = vrot.slane %v855, %v859
        %v861 = vlaneseq
        %v862 = vshrl.u32 %v861, 7
        %v863 = vsub.s32 1, %v862
        %v864 = vrot.slane %v855, %v863
        %v865 = vlaneseq
        %v866 = vshrl.u32 %v865, 7
        %v867 = vsub.s32 2, %v866
        %v868 = vrot.slane %v855, %v867
        %v869 = vlaneseq
        %v870 = vshrl.u32 %v869, 7
        %v871 = vsub.s32 3, %v870
        %v872 = vrot.slane %v855, %v871
        %v873 = vlaneseq
        %v874 = vshrl.u32 %v873, 7
        %v875 = vsub.s32 4, %v874
        %v876 = vrot.slane %v855, %v875
        %v877 = vlaneseq
        %v878 = vshrl.u32 %v877, 7
        %v879 = vsub.s32 5, %v878
        %v880 = vrot.slane %v855, %v879
        %v881 = vlaneseq
        %v882 = vshrl.u32 %v881, 7
        %v883 = vsub.s32 6, %v882
        %v884 = vrot.slane %v855, %v883
        %v885 = vlaneseq
        %v886 = vshrl.u32 %v885, 7
        %v887 = vsub.s32 7, %v886
        %v888 = vrot.slane %v855, %v887
        %v897 = vmul.f32 %v765, %v860
        %v898 = vmul.f32 %v767, %v864
        %v899 = vmul.f32 %v769, %v868
        %v900 = vmul.f32 %v771, %v872
        %v901 = vmul.f32 %v773, %v876
        %v902 = vmul.f32 %v775, %v880
        %v903 = vmul.f32 %v777, %v884
        %v904 = vmul.f32 %v779, %v888
        %v905 = vld [vmem:[%s304] sm:$0xf]
        %v906 = vld [vmem:[%s304 + $0x4] sm:$0xf]
        %v907 = vld [vmem:[%s304 + $0x8] sm:$0xf]
        %v908 = vld [vmem:[%s304 + $0xc] sm:$0xf]
        %v909 = vld [vmem:[%s304 + $0x10] sm:$0xf]
        %v910 = vld [vmem:[%s304 + $0x14] sm:$0xf]
        %v917 = vunpack.c.l.b16 %v905
        %v918 = vunpack.c.l.b16 %v906
        %v919 = vunpack.c.l.b16 %v907
        %v920 = vunpack.c.l.b16 %v908
        %v921 = vunpack.c.l.b16 %v909
        %v922 = vunpack.c.l.b16 %v910
        %v923 = vpack.c.b16 %v918, %v917
        %v924 = vpack.c.b16 %v920, %v919
        %v925 = vpack.c.b16 %v922, %v921
        %v930 = vunpack.c.l.b16 %v317
        %v931 = vunpack.c.l.b16 %v318
        %v932 = vunpack.c.l.b16 %v319
        %v933 = vunpack.c.l.b16 %v320
        %v934 = vpack.c.b16 %v931, %v930
        %v935 = vpack.c.b16 %v933, %v932
        %v939 = vsel %vm340, %v923, 0
        %v942 = vsel %vm340, %v924, 0
        %v945 = vsel %vm340, %v925, 0
        %947 = vmatprep.subr.bf16.mxu0 0
        %948 = vmatpush1.bf16.msra.mxu0 0
        %949 = vmatprep.subr.bf16.mxu0 0
        %950 = vmatpush1.bf16.msra.mxu0 0
        %951 = vmatprep.subr.bf16.mxu0 0
        %952 = vmatpush1.bf16.msra.mxu0 0
        %953 = vmatprep.subr.bf16.mxu0 0
        %954 = vmatpush1.bf16.msra.mxu0 0
        %955 = vmatprep.subr.bf16.mxu0 0
        %956 = vmatpush1.bf16.msra.mxu0 0
        %957 = vmatprep.subr.bf16.mxu0 0
        %958 = vmatpush1.bf16.msra.mxu0 0
        %959 = vmatprep.subr.bf16.mxu0 0
        %960 = vmatpush1.bf16.msra.mxu0 %v935
        %961 = vmatprep.subr.bf16.mxu0 0
        %962 = vmatpush1.bf16.msra.mxu0 %v934
        %963 = vmatprep.subr.bf16.mxu0 0
        %964 = vmatpush2.bf16.msra.mxu0 0
        %965 = vmatprep.subr.bf16.mxu0 0
        %966 = vmatpush2.bf16.msra.mxu0 0
        %967 = vmatprep.subr.bf16.mxu0 0
        %968 = vmatpush2.bf16.msra.mxu0 0
        %969 = vmatprep.subr.bf16.mxu0 0
        %970 = vmatpush2.bf16.msra.mxu0 0
        %971 = vmatprep.subr.bf16.mxu0 0
        %972 = vmatpush2.bf16.msra.mxu0 0
        %973 = vmatprep.subr.bf16.mxu0 0
        %974 = vmatpush2.bf16.msra.mxu0 0
        %975 = vmatprep.subr.bf16.mxu0 0
        %976 = vmatpush2.bf16.msra.mxu0 0
        %977 = vmatprep.subr.bf16.mxu0 0
        %978 = vmatpush2.bf16.msra.mxu0 0
        %979 = vmatprep.mubr.bf16.mxu0 0
        %980 = vmatmul.mubr.bf16.gmra.mxu0 %v939
        %v981 = vpop.f32.mrf.mxu0
        %v982 = vadd.f32 0.0, %v981
        %v983 = vpop.f32.mrf.mxu0
        %v984 = vpop.f32.mrf.mxu0
        %v985 = vadd.f32 0.0, %v984
        %v986 = vpop.f32.mrf.mxu0
        %987 = vmatprep.mubr.bf16.mxu0 0
        %988 = vmatmul.mubr.bf16.gmra.mxu0 %v942
        %v989 = vpop.f32.mrf.mxu0
        %v990 = vadd.f32 0.0, %v989
        %v991 = vpop.f32.mrf.mxu0
        %v992 = vpop.f32.mrf.mxu0
        %v993 = vadd.f32 0.0, %v992
        %v994 = vpop.f32.mrf.mxu0
        %995 = vmatprep.mubr.bf16.mxu0 0
        %996 = vmatmul.mubr.bf16.gmra.mxu0 %v945
        %v997 = vpop.f32.mrf.mxu0
        %v998 = vadd.f32 0.0, %v997
        %v999 = vpop.f32.mrf.mxu0
        %v1000 = vpop.f32.mrf.mxu0
        %v1001 = vadd.f32 0.0, %v1000
        %v1002 = vpop.f32.mrf.mxu0
        %1003 = vdwg.mxu0
        %v1005 = vcombine.high %v397, %v397
        %v1007 = vunpack.c.l.s4 1966171168
        %v1008 = vunpack.c.0.s8 %v1007
        %v1009 = vlaneseq
        %v1010 = vshrl.u32 %v1009, 7
        %v1011 = vsub.s32 %v1008, %v1010
        %v1012 = vrot.slane %v397, %v1011
        %v1014 = vunpack.c.l.s4 1966171168
        %v1015 = vunpack.c.0.s8 %v1014
        %v1016 = vlaneseq
        %v1017 = vshrl.u32 %v1016, 7
        %v1018 = vsub.s32 %v1015, %v1017
        %v1019 = vrot.slane %v1005, %v1018
        %v1020 = vcombine.high %v1012, %v1012
        %v1021 = vcombine.high %v1019, %v1019
        %v1023 = vunpack.c.l.s4 1966171168
        %v1024 = vunpack.c.0.s8 %v1023
        %v1025 = vlaneseq
        %v1026 = vshrl.u32 %v1025, 7
        %v1027 = vsub.s32 %v1024, %v1026
        %v1028 = vrot.slane %v1012, %v1027
        %v1030 = vunpack.c.l.s4 1966171168
        %v1031 = vunpack.c.0.s8 %v1030
        %v1032 = vlaneseq
        %v1033 = vshrl.u32 %v1032, 7
        %v1034 = vsub.s32 %v1031, %v1033
        %v1035 = vrot.slane %v1019, %v1034
        %v1037 = vunpack.c.l.s4 1966171168
        %v1038 = vunpack.c.0.s8 %v1037
        %v1039 = vlaneseq
        %v1040 = vshrl.u32 %v1039, 7
        %v1041 = vsub.s32 %v1038, %v1040
        %v1042 = vrot.slane %v1020, %v1041
        %v1044 = vunpack.c.l.s4 1966171168
        %v1045 = vunpack.c.0.s8 %v1044
        %v1046 = vlaneseq
        %v1047 = vshrl.u32 %v1046, 7
        %v1048 = vsub.s32 %v1045, %v1047
        %v1049 = vrot.slane %v1021, %v1048
        %v1050 = vcombine.high %v1028, %v1028
        %v1051 = vcombine.high %v1035, %v1035
        %v1052 = vcombine.high %v1042, %v1042
        %v1053 = vcombine.high %v1049, %v1049
        %v1054 = vlaneseq
        %v1055 = vshrl.u32 %v1054, 7
        %v1056 = vsub.s32 0, %v1055
        %v1057 = vrot.slane %v1028, %v1056
        %v1058 = vlaneseq
        %v1059 = vshrl.u32 %v1058, 7
        %v1060 = vsub.s32 0, %v1059
        %v1061 = vrot.slane %v1042, %v1060
        %v1062 = vlaneseq
        %v1063 = vshrl.u32 %v1062, 7
        %v1064 = vsub.s32 0, %v1063
        %v1065 = vrot.slane %v1050, %v1064
        %v1066 = vlaneseq
        %v1067 = vshrl.u32 %v1066, 7
        %v1068 = vsub.s32 0, %v1067
        %v1069 = vrot.slane %v1052, %v1068
        %v1070 = vlaneseq
        %v1071 = vshrl.u32 %v1070, 7
        %v1072 = vsub.s32 0, %v1071
        %v1073 = vrot.slane %v1035, %v1072
        %v1074 = vlaneseq
        %v1075 = vshrl.u32 %v1074, 7
        %v1076 = vsub.s32 0, %v1075
        %v1077 = vrot.slane %v1049, %v1076
        %v1078 = vlaneseq
        %v1079 = vshrl.u32 %v1078, 7
        %v1080 = vsub.s32 0, %v1079
        %v1081 = vrot.slane %v1051, %v1080
        %v1082 = vlaneseq
        %v1083 = vshrl.u32 %v1082, 7
        %v1084 = vsub.s32 0, %v1083
        %v1085 = vrot.slane %v1053, %v1084
        %1100 = vrot.lane.b32.xlu0 %v982, 32
        %v1101 = vpop.permute.xlu0 %1100
        %1102 = vrot.lane.b32.xlu0 %v985, 32
        %v1103 = vpop.permute.xlu0 %1102
        %1104 = vrot.lane.b32.xlu0 %v990, 32
        %v1105 = vpop.permute.xlu0 %1104
        %1106 = vrot.lane.b32.xlu0 %v993, 32
        %v1107 = vpop.permute.xlu0 %1106
        %1108 = vrot.lane.b32.xlu0 %v998, 32
        %v1109 = vpop.permute.xlu0 %1108
        %1110 = vrot.lane.b32.xlu0 %v1001, 32
        %v1111 = vpop.permute.xlu0 %1110
        %v1118 = vadd.f32 %v1057, %v1101
        %v1119 = vadd.f32 %v1057, %v1103
        %v1120 = vadd.f32 %v1057, %v1105
        %v1121 = vadd.f32 %v1057, %v1107
        %v1122 = vadd.f32 %v1057, %v1109
        %v1123 = vadd.f32 %v1057, %v1111
        %v1124 = vadd.f32 %v1061, %v1101
        %v1125 = vadd.f32 %v1061, %v1103
        %v1126 = vadd.f32 %v1061, %v1105
        %v1127 = vadd.f32 %v1061, %v1107
        %v1128 = vadd.f32 %v1061, %v1109
        %v1129 = vadd.f32 %v1061, %v1111
        %v1130 = vadd.f32 %v1065, %v1101
        %v1131 = vadd.f32 %v1065, %v1103
        %v1132 = vadd.f32 %v1065, %v1105
        %v1133 = vadd.f32 %v1065, %v1107
        %v1134 = vadd.f32 %v1065, %v1109
        %v1135 = vadd.f32 %v1065, %v1111
        %v1136 = vadd.f32 %v1069, %v1101
        %v1137 = vadd.f32 %v1069, %v1103
        %v1138 = vadd.f32 %v1069, %v1105
        %v1139 = vadd.f32 %v1069, %v1107
        %v1140 = vadd.f32 %v1069, %v1109
        %v1141 = vadd.f32 %v1069, %v1111
        %v1142 = vadd.f32 %v1073, %v1101
        %v1143 = vadd.f32 %v1073, %v1103
        %v1144 = vadd.f32 %v1073, %v1105
        %v1145 = vadd.f32 %v1073, %v1107
        %v1146 = vadd.f32 %v1073, %v1109
        %v1147 = vadd.f32 %v1073, %v1111
        %v1148 = vadd.f32 %v1077, %v1101
        %v1149 = vadd.f32 %v1077, %v1103
        %v1150 = vadd.f32 %v1077, %v1105
        %v1151 = vadd.f32 %v1077, %v1107
        %v1152 = vadd.f32 %v1077, %v1109
        %v1153 = vadd.f32 %v1077, %v1111
        %v1154 = vadd.f32 %v1081, %v1101
        %v1155 = vadd.f32 %v1081, %v1103
        %v1156 = vadd.f32 %v1081, %v1105
        %v1157 = vadd.f32 %v1081, %v1107
        %v1158 = vadd.f32 %v1081, %v1109
        %v1159 = vadd.f32 %v1081, %v1111
        %v1160 = vadd.f32 %v1085, %v1101
        %v1161 = vadd.f32 %v1085, %v1103
        %v1162 = vadd.f32 %v1085, %v1105
        %v1163 = vadd.f32 %v1085, %v1107
        %v1164 = vadd.f32 %v1085, %v1109
        %v1165 = vadd.f32 %v1085, %v1111
        %vm1166 = vcmp.ge.f32.partialorder %v1118, 0.0
        %vm1167 = vcmp.ge.f32.partialorder %v1119, 0.0
        %vm1168 = vcmp.ge.f32.partialorder %v1120, 0.0
        %vm1169 = vcmp.ge.f32.partialorder %v1121, 0.0
        %vm1170 = vcmp.ge.f32.partialorder %v1122, 0.0
        %vm1171 = vcmp.ge.f32.partialorder %v1123, 0.0
        %vm1172 = vcmp.ge.f32.partialorder %v1124, 0.0
        %vm1173 = vcmp.ge.f32.partialorder %v1125, 0.0
        %vm1174 = vcmp.ge.f32.partialorder %v1126, 0.0
        %vm1175 = vcmp.ge.f32.partialorder %v1127, 0.0
        %vm1176 = vcmp.ge.f32.partialorder %v1128, 0.0
        %vm1177 = vcmp.ge.f32.partialorder %v1129, 0.0
        %vm1178 = vcmp.ge.f32.partialorder %v1130, 0.0
        %vm1179 = vcmp.ge.f32.partialorder %v1131, 0.0
        %vm1180 = vcmp.ge.f32.partialorder %v1132, 0.0
        %vm1181 = vcmp.ge.f32.partialorder %v1133, 0.0
        %vm1182 = vcmp.ge.f32.partialorder %v1134, 0.0
        %vm1183 = vcmp.ge.f32.partialorder %v1135, 0.0
        %vm1184 = vcmp.ge.f32.partialorder %v1136, 0.0
        %vm1185 = vcmp.ge.f32.partialorder %v1137, 0.0
        %vm1186 = vcmp.ge.f32.partialorder %v1138, 0.0
        %vm1187 = vcmp.ge.f32.partialorder %v1139, 0.0
        %vm1188 = vcmp.ge.f32.partialorder %v1140, 0.0
        %vm1189 = vcmp.ge.f32.partialorder %v1141, 0.0
        %vm1190 = vcmp.ge.f32.partialorder %v1142, 0.0
        %vm1191 = vcmp.ge.f32.partialorder %v1143, 0.0
        %vm1192 = vcmp.ge.f32.partialorder %v1144, 0.0
        %vm1193 = vcmp.ge.f32.partialorder %v1145, 0.0
        %vm1194 = vcmp.ge.f32.partialorder %v1146, 0.0
        %vm1195 = vcmp.ge.f32.partialorder %v1147, 0.0
        %vm1196 = vcmp.ge.f32.partialorder %v1148, 0.0
        %vm1197 = vcmp.ge.f32.partialorder %v1149, 0.0
        %vm1198 = vcmp.ge.f32.partialorder %v1150, 0.0
        %vm1199 = vcmp.ge.f32.partialorder %v1151, 0.0
        %vm1200 = vcmp.ge.f32.partialorder %v1152, 0.0
        %vm1201 = vcmp.ge.f32.partialorder %v1153, 0.0
        %vm1202 = vcmp.ge.f32.partialorder %v1154, 0.0
        %vm1203 = vcmp.ge.f32.partialorder %v1155, 0.0
        %vm1204 = vcmp.ge.f32.partialorder %v1156, 0.0
        %vm1205 = vcmp.ge.f32.partialorder %v1157, 0.0
        %vm1206 = vcmp.ge.f32.partialorder %v1158, 0.0
        %vm1207 = vcmp.ge.f32.partialorder %v1159, 0.0
        %vm1208 = vcmp.ge.f32.partialorder %v1160, 0.0
        %vm1209 = vcmp.ge.f32.partialorder %v1161, 0.0
        %vm1210 = vcmp.ge.f32.partialorder %v1162, 0.0
        %vm1211 = vcmp.ge.f32.partialorder %v1163, 0.0
        %vm1212 = vcmp.ge.f32.partialorder %v1164, 0.0
        %vm1213 = vcmp.ge.f32.partialorder %v1165, 0.0
        %v1214 = vmul.f32 %v1118, 0.01
        %v1215 = vmul.f32 %v1119, 0.01
        %v1216 = vmul.f32 %v1120, 0.01
        %v1217 = vmul.f32 %v1121, 0.01
        %v1218 = vmul.f32 %v1122, 0.01
        %v1219 = vmul.f32 %v1123, 0.01
        %v1220 = vmul.f32 %v1124, 0.01
        %v1221 = vmul.f32 %v1125, 0.01
        %v1222 = vmul.f32 %v1126, 0.01
        %v1223 = vmul.f32 %v1127, 0.01
        %v1224 = vmul.f32 %v1128, 0.01
        %v1225 = vmul.f32 %v1129, 0.01
        %v1226 = vmul.f32 %v1130, 0.01
        %v1227 = vmul.f32 %v1131, 0.01
        %v1228 = vmul.f32 %v1132, 0.01
        %v1229 = vmul.f32 %v1133, 0.01
        %v1230 = vmul.f32 %v1134, 0.01
        %v1231 = vmul.f32 %v1135, 0.01
        %v1232 = vmul.f32 %v1136, 0.01
        %v1233 = vmul.f32 %v1137, 0.01
        %v1234 = vmul.f32 %v1138, 0.01
        %v1235 = vmul.f32 %v1139, 0.01
        %v1236 = vmul.f32 %v1140, 0.01
        %v1237 = vmul.f32 %v1141, 0.01
        %v1238 = vmul.f32 %v1142, 0.01
        %v1239 = vmul.f32 %v1143, 0.01
        %v1240 = vmul.f32 %v1144, 0.01
        %v1241 = vmul.f32 %v1145, 0.01
        %v1242 = vmul.f32 %v1146, 0.01
        %v1243 = vmul.f32 %v1147, 0.01
        %v1244 = vmul.f32 %v1148, 0.01
        %v1245 = vmul.f32 %v1149, 0.01
        %v1246 = vmul.f32 %v1150, 0.01
        %v1247 = vmul.f32 %v1151, 0.01
        %v1248 = vmul.f32 %v1152, 0.01
        %v1249 = vmul.f32 %v1153, 0.01
        %v1250 = vmul.f32 %v1154, 0.01
        %v1251 = vmul.f32 %v1155, 0.01
        %v1252 = vmul.f32 %v1156, 0.01
        %v1253 = vmul.f32 %v1157, 0.01
        %v1254 = vmul.f32 %v1158, 0.01
        %v1255 = vmul.f32 %v1159, 0.01
        %v1256 = vmul.f32 %v1160, 0.01
        %v1257 = vmul.f32 %v1161, 0.01
        %v1258 = vmul.f32 %v1162, 0.01
        %v1259 = vmul.f32 %v1163, 0.01
        %v1260 = vmul.f32 %v1164, 0.01
        %v1261 = vmul.f32 %v1165, 0.01
        %v1262 = vsel %vm1166, %v1118, %v1214
        %v1263 = vsel %vm1167, %v1119, %v1215
        %v1264 = vsel %vm1168, %v1120, %v1216
        %v1265 = vsel %vm1169, %v1121, %v1217
        %v1266 = vsel %vm1170, %v1122, %v1218
        %v1267 = vsel %vm1171, %v1123, %v1219
        %v1268 = vsel %vm1172, %v1124, %v1220
        %v1269 = vsel %vm1173, %v1125, %v1221
        %v1270 = vsel %vm1174, %v1126, %v1222
        %v1271 = vsel %vm1175, %v1127, %v1223
        %v1272 = vsel %vm1176, %v1128, %v1224
        %v1273 = vsel %vm1177, %v1129, %v1225
        %v1274 = vsel %vm1178, %v1130, %v1226
        %v1275 = vsel %vm1179, %v1131, %v1227
        %v1276 = vsel %vm1180, %v1132, %v1228
        %v1277 = vsel %vm1181, %v1133, %v1229
        %v1278 = vsel %vm1182, %v1134, %v1230
        %v1279 = vsel %vm1183, %v1135, %v1231
        %v1280 = vsel %vm1184, %v1136, %v1232
        %v1281 = vsel %vm1185, %v1137, %v1233
        %v1282 = vsel %vm1186, %v1138, %v1234
        %v1283 = vsel %vm1187, %v1139, %v1235
        %v1284 = vsel %vm1188, %v1140, %v1236
        %v1285 = vsel %vm1189, %v1141, %v1237
        %v1286 = vsel %vm1190, %v1142, %v1238
        %v1287 = vsel %vm1191, %v1143, %v1239
        %v1288 = vsel %vm1192, %v1144, %v1240
        %v1289 = vsel %vm1193, %v1145, %v1241
        %v1290 = vsel %vm1194, %v1146, %v1242
        %v1291 = vsel %vm1195, %v1147, %v1243
        %v1292 = vsel %vm1196, %v1148, %v1244
        %v1293 = vsel %vm1197, %v1149, %v1245
        %v1294 = vsel %vm1198, %v1150, %v1246
        %v1295 = vsel %vm1199, %v1151, %v1247
        %v1296 = vsel %vm1200, %v1152, %v1248
        %v1297 = vsel %vm1201, %v1153, %v1249
        %v1298 = vsel %vm1202, %v1154, %v1250
        %v1299 = vsel %vm1203, %v1155, %v1251
        %v1300 = vsel %vm1204, %v1156, %v1252
        %v1301 = vsel %vm1205, %v1157, %v1253
        %v1302 = vsel %vm1206, %v1158, %v1254
        %v1303 = vsel %vm1207, %v1159, %v1255
        %v1304 = vsel %vm1208, %v1160, %v1256
        %v1305 = vsel %vm1209, %v1161, %v1257
        %v1306 = vsel %vm1210, %v1162, %v1258
        %v1307 = vsel %vm1211, %v1163, %v1259
        %v1308 = vsel %vm1212, %v1164, %v1260
        %v1309 = vsel %vm1213, %v1165, %v1261
        %v1310 = vlaneseq
        %v1311 = vshrl.u32 %v1310, 7
        %v1312 = vsub.s32 0, %v1311
        %v1313 = vrot.slane %v324, %v1312
        %1315 = vrot.lane.b32.xlu0 %v1313, 32
        %v1316 = vpop.permute.xlu0 %1315
        %v1318 = vmul.f32 %v1262, %v1316
        %v1319 = vmul.f32 %v1263, %v1316
        %v1320 = vmul.f32 %v1264, %v1316
        %v1321 = vmul.f32 %v1265, %v1316
        %v1322 = vmul.f32 %v1266, %v1316
        %v1323 = vmul.f32 %v1267, %v1316
        %v1324 = vmul.f32 %v1268, %v1316
        %v1325 = vmul.f32 %v1269, %v1316
        %v1326 = vmul.f32 %v1270, %v1316
        %v1327 = vmul.f32 %v1271, %v1316
        %v1328 = vmul.f32 %v1272, %v1316
        %v1329 = vmul.f32 %v1273, %v1316
        %v1330 = vmul.f32 %v1274, %v1316
        %v1331 = vmul.f32 %v1275, %v1316
        %v1332 = vmul.f32 %v1276, %v1316
        %v1333 = vmul.f32 %v1277, %v1316
        %v1334 = vmul.f32 %v1278, %v1316
        %v1335 = vmul.f32 %v1279, %v1316
        %v1336 = vmul.f32 %v1280, %v1316
        %v1337 = vmul.f32 %v1281, %v1316
        %v1338 = vmul.f32 %v1282, %v1316
        %v1339 = vmul.f32 %v1283, %v1316
        %v1340 = vmul.f32 %v1284, %v1316
        %v1341 = vmul.f32 %v1285, %v1316
        %v1342 = vmul.f32 %v1286, %v1316
        %v1343 = vmul.f32 %v1287, %v1316
        %v1344 = vmul.f32 %v1288, %v1316
        %v1345 = vmul.f32 %v1289, %v1316
        %v1346 = vmul.f32 %v1290, %v1316
        %v1347 = vmul.f32 %v1291, %v1316
        %v1348 = vmul.f32 %v1292, %v1316
        %v1349 = vmul.f32 %v1293, %v1316
        %v1350 = vmul.f32 %v1294, %v1316
        %v1351 = vmul.f32 %v1295, %v1316
        %v1352 = vmul.f32 %v1296, %v1316
        %v1353 = vmul.f32 %v1297, %v1316
        %v1354 = vmul.f32 %v1298, %v1316
        %v1355 = vmul.f32 %v1299, %v1316
        %v1356 = vmul.f32 %v1300, %v1316
        %v1357 = vmul.f32 %v1301, %v1316
        %v1358 = vmul.f32 %v1302, %v1316
        %v1359 = vmul.f32 %v1303, %v1316
        %v1360 = vmul.f32 %v1304, %v1316
        %v1361 = vmul.f32 %v1305, %v1316
        %v1362 = vmul.f32 %v1306, %v1316
        %v1363 = vmul.f32 %v1307, %v1316
        %v1364 = vmul.f32 %v1308, %v1316
        %v1365 = vmul.f32 %v1309, %v1316
        %1414 = vrot.lane.b32.xlu0 %v1318, 96
        %v1415 = vpop.permute.xlu0 %1414
        %1416 = vrot.lane.b32.xlu0 %v1319, 96
        %v1417 = vpop.permute.xlu0 %1416
        %1418 = vrot.lane.b32.xlu0 %v1320, 96
        %v1419 = vpop.permute.xlu0 %1418
        %1420 = vrot.lane.b32.xlu0 %v1321, 96
        %v1421 = vpop.permute.xlu0 %1420
        %1422 = vrot.lane.b32.xlu0 %v1322, 96
        %v1423 = vpop.permute.xlu0 %1422
        %1424 = vrot.lane.b32.xlu0 %v1323, 96
        %v1425 = vpop.permute.xlu0 %1424
        %1426 = vrot.lane.b32.xlu0 %v1324, 96
        %v1427 = vpop.permute.xlu0 %1426
        %1428 = vrot.lane.b32.xlu0 %v1325, 96
        %v1429 = vpop.permute.xlu0 %1428
        %1430 = vrot.lane.b32.xlu0 %v1326, 96
        %v1431 = vpop.permute.xlu0 %1430
        %1432 = vrot.lane.b32.xlu0 %v1327, 96
        %v1433 = vpop.permute.xlu0 %1432
        %1434 = vrot.lane.b32.xlu0 %v1328, 96
        %v1435 = vpop.permute.xlu0 %1434
        %1436 = vrot.lane.b32.xlu0 %v1329, 96
        %v1437 = vpop.permute.xlu0 %1436
        %1438 = vrot.lane.b32.xlu0 %v1330, 96
        %v1439 = vpop.permute.xlu0 %1438
        %1440 = vrot.lane.b32.xlu0 %v1331, 96
        %v1441 = vpop.permute.xlu0 %1440
        %1442 = vrot.lane.b32.xlu0 %v1332, 96
        %v1443 = vpop.permute.xlu0 %1442
        %1444 = vrot.lane.b32.xlu0 %v1333, 96
        %v1445 = vpop.permute.xlu0 %1444
        %1446 = vrot.lane.b32.xlu0 %v1334, 96
        %v1447 = vpop.permute.xlu0 %1446
        %1448 = vrot.lane.b32.xlu0 %v1335, 96
        %v1449 = vpop.permute.xlu0 %1448
        %1450 = vrot.lane.b32.xlu0 %v1336, 96
        %v1451 = vpop.permute.xlu0 %1450
        %1452 = vrot.lane.b32.xlu0 %v1337, 96
        %v1453 = vpop.permute.xlu0 %1452
        %1454 = vrot.lane.b32.xlu0 %v1338, 96
        %v1455 = vpop.permute.xlu0 %1454
        %1456 = vrot.lane.b32.xlu0 %v1339, 96
        %v1457 = vpop.permute.xlu0 %1456
        %1458 = vrot.lane.b32.xlu0 %v1340, 96
        %v1459 = vpop.permute.xlu0 %1458
        %1460 = vrot.lane.b32.xlu0 %v1341, 96
        %v1461 = vpop.permute.xlu0 %1460
        %1462 = vrot.lane.b32.xlu0 %v1342, 96
        %v1463 = vpop.permute.xlu0 %1462
        %1464 = vrot.lane.b32.xlu0 %v1343, 96
        %v1465 = vpop.permute.xlu0 %1464
        %1466 = vrot.lane.b32.xlu0 %v1344, 96
        %v1467 = vpop.permute.xlu0 %1466
        %1468 = vrot.lane.b32.xlu0 %v1345, 96
        %v1469 = vpop.permute.xlu0 %1468
        %1470 = vrot.lane.b32.xlu0 %v1346, 96
        %v1471 = vpop.permute.xlu0 %1470
        %1472 = vrot.lane.b32.xlu0 %v1347, 96
        %v1473 = vpop.permute.xlu0 %1472
        %1474 = vrot.lane.b32.xlu0 %v1348, 96
        %v1475 = vpop.permute.xlu0 %1474
        %1476 = vrot.lane.b32.xlu0 %v1349, 96
        %v1477 = vpop.permute.xlu0 %1476
        %1478 = vrot.lane.b32.xlu0 %v1350, 96
        %v1479 = vpop.permute.xlu0 %1478
        %1480 = vrot.lane.b32.xlu0 %v1351, 96
        %v1481 = vpop.permute.xlu0 %1480
        %1482 = vrot.lane.b32.xlu0 %v1352, 96
        %v1483 = vpop.permute.xlu0 %1482
        %1484 = vrot.lane.b32.xlu0 %v1353, 96
        %v1485 = vpop.permute.xlu0 %1484
        %1486 = vrot.lane.b32.xlu0 %v1354, 96
        %v1487 = vpop.permute.xlu0 %1486
        %1488 = vrot.lane.b32.xlu0 %v1355, 96
        %v1489 = vpop.permute.xlu0 %1488
        %1490 = vrot.lane.b32.xlu0 %v1356, 96
        %v1491 = vpop.permute.xlu0 %1490
        %1492 = vrot.lane.b32.xlu0 %v1357, 96
        %v1493 = vpop.permute.xlu0 %1492
        %1494 = vrot.lane.b32.xlu0 %v1358, 96
        %v1495 = vpop.permute.xlu0 %1494
        %1496 = vrot.lane.b32.xlu0 %v1359, 96
        %v1497 = vpop.permute.xlu0 %1496
        %1498 = vrot.lane.b32.xlu0 %v1360, 96
        %v1499 = vpop.permute.xlu0 %1498
        %1500 = vrot.lane.b32.xlu0 %v1361, 96
        %v1501 = vpop.permute.xlu0 %1500
        %1502 = vrot.lane.b32.xlu0 %v1362, 96
        %v1503 = vpop.permute.xlu0 %1502
        %1504 = vrot.lane.b32.xlu0 %v1363, 96
        %v1505 = vpop.permute.xlu0 %1504
        %1506 = vrot.lane.b32.xlu0 %v1364, 96
        %v1507 = vpop.permute.xlu0 %1506
        %1508 = vrot.lane.b32.xlu0 %v1365, 96
        %v1509 = vpop.permute.xlu0 %1508
        %v1558 = vsel %vm340, %v1415, 0.0
        %1559 = vadd.xlane.f32.xlu0 %v1558
        %v1560 = vpop.xlane.xlu0 %1559
        %v1561 = vsel %vm340, %v1417, 0.0
        %1562 = vadd.xlane.f32.xlu0 %v1561
        %v1563 = vpop.xlane.xlu0 %1562
        %v1564 = vsel %vm340, %v1419, 0.0
        %1565 = vadd.xlane.f32.xlu0 %v1564
        %v1566 = vpop.xlane.xlu0 %1565
        %v1567 = vsel %vm340, %v1421, 0.0
        %1568 = vadd.xlane.f32.xlu0 %v1567
        %v1569 = vpop.xlane.xlu0 %1568
        %v1570 = vsel %vm340, %v1423, 0.0
        %1571 = vadd.xlane.f32.xlu0 %v1570
        %v1572 = vpop.xlane.xlu0 %1571
        %v1573 = vsel %vm340, %v1425, 0.0
        %1574 = vadd.xlane.f32.xlu0 %v1573
        %v1575 = vpop.xlane.xlu0 %1574
        %v1576 = vsel %vm340, %v1427, 0.0
        %1577 = vadd.xlane.f32.xlu0 %v1576
        %v1578 = vpop.xlane.xlu0 %1577
        %v1579 = vsel %vm340, %v1429, 0.0
        %1580 = vadd.xlane.f32.xlu0 %v1579
        %v1581 = vpop.xlane.xlu0 %1580
        %v1582 = vsel %vm340, %v1431, 0.0
        %1583 = vadd.xlane.f32.xlu0 %v1582
        %v1584 = vpop.xlane.xlu0 %1583
        %v1585 = vsel %vm340, %v1433, 0.0
        %1586 = vadd.xlane.f32.xlu0 %v1585
        %v1587 = vpop.xlane.xlu0 %1586
        %v1588 = vsel %vm340, %v1435, 0.0
        %1589 = vadd.xlane.f32.xlu0 %v1588
        %v1590 = vpop.xlane.xlu0 %1589
        %v1591 = vsel %vm340, %v1437, 0.0
        %1592 = vadd.xlane.f32.xlu0 %v1591
        %v1593 = vpop.xlane.xlu0 %1592
        %v1594 = vsel %vm340, %v1439, 0.0
        %1595 = vadd.xlane.f32.xlu0 %v1594
        %v1596 = vpop.xlane.xlu0 %1595
        %v1597 = vsel %vm340, %v1441, 0.0
        %1598 = vadd.xlane.f32.xlu0 %v1597
        %v1599 = vpop.xlane.xlu0 %1598
        %v1600 = vsel %vm340, %v1443, 0.0
        %1601 = vadd.xlane.f32.xlu0 %v1600
        %v1602 = vpop.xlane.xlu0 %1601
        %v1603 = vsel %vm340, %v1445, 0.0
        %1604 = vadd.xlane.f32.xlu0 %v1603
        %v1605 = vpop.xlane.xlu0 %1604
        %v1606 = vsel %vm340, %v1447, 0.0
        %1607 = vadd.xlane.f32.xlu0 %v1606
        %v1608 = vpop.xlane.xlu0 %1607
        %v1609 = vsel %vm340, %v1449, 0.0
        %1610 = vadd.xlane.f32.xlu0 %v1609
        %v1611 = vpop.xlane.xlu0 %1610
        %v1612 = vsel %vm340, %v1451, 0.0
        %1613 = vadd.xlane.f32.xlu0 %v1612
        %v1614 = vpop.xlane.xlu0 %1613
        %v1615 = vsel %vm340, %v1453, 0.0
        %1616 = vadd.xlane.f32.xlu0 %v1615
        %v1617 = vpop.xlane.xlu0 %1616
        %v1618 = vsel %vm340, %v1455, 0.0
        %1619 = vadd.xlane.f32.xlu0 %v1618
        %v1620 = vpop.xlane.xlu0 %1619
        %v1621 = vsel %vm340, %v1457, 0.0
        %1622 = vadd.xlane.f32.xlu0 %v1621
        %v1623 = vpop.xlane.xlu0 %1622
        %v1624 = vsel %vm340, %v1459, 0.0
        %1625 = vadd.xlane.f32.xlu0 %v1624
        %v1626 = vpop.xlane.xlu0 %1625
        %v1627 = vsel %vm340, %v1461, 0.0
        %1628 = vadd.xlane.f32.xlu0 %v1627
        %v1629 = vpop.xlane.xlu0 %1628
        %v1630 = vsel %vm340, %v1463, 0.0
        %1631 = vadd.xlane.f32.xlu0 %v1630
        %v1632 = vpop.xlane.xlu0 %1631
        %v1633 = vsel %vm340, %v1465, 0.0
        %1634 = vadd.xlane.f32.xlu0 %v1633
        %v1635 = vpop.xlane.xlu0 %1634
        %v1636 = vsel %vm340, %v1467, 0.0
        %1637 = vadd.xlane.f32.xlu0 %v1636
        %v1638 = vpop.xlane.xlu0 %1637
        %v1639 = vsel %vm340, %v1469, 0.0
        %1640 = vadd.xlane.f32.xlu0 %v1639
        %v1641 = vpop.xlane.xlu0 %1640
        %v1642 = vsel %vm340, %v1471, 0.0
        %1643 = vadd.xlane.f32.xlu0 %v1642
        %v1644 = vpop.xlane.xlu0 %1643
        %v1645 = vsel %vm340, %v1473, 0.0
        %1646 = vadd.xlane.f32.xlu0 %v1645
        %v1647 = vpop.xlane.xlu0 %1646
        %v1648 = vsel %vm340, %v1475, 0.0
        %1649 = vadd.xlane.f32.xlu0 %v1648
        %v1650 = vpop.xlane.xlu0 %1649
        %v1651 = vsel %vm340, %v1477, 0.0
        %1652 = vadd.xlane.f32.xlu0 %v1651
        %v1653 = vpop.xlane.xlu0 %1652
        %v1654 = vsel %vm340, %v1479, 0.0
        %1655 = vadd.xlane.f32.xlu0 %v1654
        %v1656 = vpop.xlane.xlu0 %1655
        %v1657 = vsel %vm340, %v1481, 0.0
        %1658 = vadd.xlane.f32.xlu0 %v1657
        %v1659 = vpop.xlane.xlu0 %1658
        %v1660 = vsel %vm340, %v1483, 0.0
        %1661 = vadd.xlane.f32.xlu0 %v1660
        %v1662 = vpop.xlane.xlu0 %1661
        %v1663 = vsel %vm340, %v1485, 0.0
        %1664 = vadd.xlane.f32.xlu0 %v1663
        %v1665 = vpop.xlane.xlu0 %1664
        %v1666 = vsel %vm340, %v1487, 0.0
        %1667 = vadd.xlane.f32.xlu0 %v1666
        %v1668 = vpop.xlane.xlu0 %1667
        %v1669 = vsel %vm340, %v1489, 0.0
        %1670 = vadd.xlane.f32.xlu0 %v1669
        %v1671 = vpop.xlane.xlu0 %1670
        %v1672 = vsel %vm340, %v1491, 0.0
        %1673 = vadd.xlane.f32.xlu0 %v1672
        %v1674 = vpop.xlane.xlu0 %1673
        %v1675 = vsel %vm340, %v1493, 0.0
        %1676 = vadd.xlane.f32.xlu0 %v1675
        %v1677 = vpop.xlane.xlu0 %1676
        %v1678 = vsel %vm340, %v1495, 0.0
        %1679 = vadd.xlane.f32.xlu0 %v1678
        %v1680 = vpop.xlane.xlu0 %1679
        %v1681 = vsel %vm340, %v1497, 0.0
        %1682 = vadd.xlane.f32.xlu0 %v1681
        %v1683 = vpop.xlane.xlu0 %1682
        %v1684 = vsel %vm340, %v1499, 0.0
        %1685 = vadd.xlane.f32.xlu0 %v1684
        %v1686 = vpop.xlane.xlu0 %1685
        %v1687 = vsel %vm340, %v1501, 0.0
        %1688 = vadd.xlane.f32.xlu0 %v1687
        %v1689 = vpop.xlane.xlu0 %1688
        %v1690 = vsel %vm340, %v1503, 0.0
        %1691 = vadd.xlane.f32.xlu0 %v1690
        %v1692 = vpop.xlane.xlu0 %1691
        %v1693 = vsel %vm340, %v1505, 0.0
        %1694 = vadd.xlane.f32.xlu0 %v1693
        %v1695 = vpop.xlane.xlu0 %1694
        %v1696 = vsel %vm340, %v1507, 0.0
        %1697 = vadd.xlane.f32.xlu0 %v1696
        %v1698 = vpop.xlane.xlu0 %1697
        %v1699 = vsel %vm340, %v1509, 0.0
        %1700 = vadd.xlane.f32.xlu0 %v1699
        %v1701 = vpop.xlane.xlu0 %1700
        %1703 = vbcast.lane.b32.xlu0 %v616, 256
        %v1704 = vpop.permute.xlu0 %1703
        %s1706 = sor.u32 256, 8
        %1707 = vbcast.lane.b32.xlu0 %v616, %s1706
        %v1708 = vpop.permute.xlu0 %1707
        %s1710 = sor.u32 256, 16
        %1711 = vbcast.lane.b32.xlu0 %v616, %s1710
        %v1712 = vpop.permute.xlu0 %1711
        %s1714 = sor.u32 256, 24
        %1715 = vbcast.lane.b32.xlu0 %v616, %s1714
        %v1716 = vpop.permute.xlu0 %1715
        %s1718 = sor.u32 256, 32
        %1719 = vbcast.lane.b32.xlu0 %v616, %s1718
        %v1720 = vpop.permute.xlu0 %1719
        %s1722 = sor.u32 256, 40
        %1723 = vbcast.lane.b32.xlu0 %v616, %s1722
        %v1724 = vpop.permute.xlu0 %1723
        %v1731 = vadd.f32 %v1560, %v1704
        %v1732 = vadd.f32 %v1563, %v1708
        %v1733 = vadd.f32 %v1566, %v1712
        %v1734 = vadd.f32 %v1569, %v1716
        %v1735 = vadd.f32 %v1572, %v1720
        %v1736 = vadd.f32 %v1575, %v1724
        %v1737 = vadd.f32 %v1578, %v1704
        %v1738 = vadd.f32 %v1581, %v1708
        %v1739 = vadd.f32 %v1584, %v1712
        %v1740 = vadd.f32 %v1587, %v1716
        %v1741 = vadd.f32 %v1590, %v1720
        %v1742 = vadd.f32 %v1593, %v1724
        %v1743 = vadd.f32 %v1596, %v1704
        %v1744 = vadd.f32 %v1599, %v1708
        %v1745 = vadd.f32 %v1602, %v1712
        %v1746 = vadd.f32 %v1605, %v1716
        %v1747 = vadd.f32 %v1608, %v1720
        %v1748 = vadd.f32 %v1611, %v1724
        %v1749 = vadd.f32 %v1614, %v1704
        %v1750 = vadd.f32 %v1617, %v1708
        %v1751 = vadd.f32 %v1620, %v1712
        %v1752 = vadd.f32 %v1623, %v1716
        %v1753 = vadd.f32 %v1626, %v1720
        %v1754 = vadd.f32 %v1629, %v1724
        %v1755 = vadd.f32 %v1632, %v1704
        %v1756 = vadd.f32 %v1635, %v1708
        %v1757 = vadd.f32 %v1638, %v1712
        %v1758 = vadd.f32 %v1641, %v1716
        %v1759 = vadd.f32 %v1644, %v1720
        %v1760 = vadd.f32 %v1647, %v1724
        %v1761 = vadd.f32 %v1650, %v1704
        %v1762 = vadd.f32 %v1653, %v1708
        %v1763 = vadd.f32 %v1656, %v1712
        %v1764 = vadd.f32 %v1659, %v1716
        %v1765 = vadd.f32 %v1662, %v1720
        %v1766 = vadd.f32 %v1665, %v1724
        %v1767 = vadd.f32 %v1668, %v1704
        %v1768 = vadd.f32 %v1671, %v1708
        %v1769 = vadd.f32 %v1674, %v1712
        %v1770 = vadd.f32 %v1677, %v1716
        %v1771 = vadd.f32 %v1680, %v1720
        %v1772 = vadd.f32 %v1683, %v1724
        %v1773 = vadd.f32 %v1686, %v1704
        %v1774 = vadd.f32 %v1689, %v1708
        %v1775 = vadd.f32 %v1692, %v1712
        %v1776 = vadd.f32 %v1695, %v1716
        %v1777 = vadd.f32 %v1698, %v1720
        %v1778 = vadd.f32 %v1701, %v1724
        %1827 = vset.pattern.permute.xlu0 0
        %1828 = vperm.xlu0 %1827, %v1731
        %v1829 = vpop.permute.xlu0 %1828
        %1830 = vset.pattern.permute.xlu0 0
        %1831 = vperm.xlu0 %1830, %v1732
        %v1832 = vpop.permute.xlu0 %1831
        %1833 = vset.pattern.permute.xlu0 0
        %1834 = vperm.xlu0 %1833, %v1733
        %v1835 = vpop.permute.xlu0 %1834
        %1836 = vset.pattern.permute.xlu0 0
        %1837 = vperm.xlu0 %1836, %v1734
        %v1838 = vpop.permute.xlu0 %1837
        %1839 = vset.pattern.permute.xlu0 0
        %1840 = vperm.xlu0 %1839, %v1735
        %v1841 = vpop.permute.xlu0 %1840
        %1842 = vset.pattern.permute.xlu0 0
        %1843 = vperm.xlu0 %1842, %v1736
        %v1844 = vpop.permute.xlu0 %1843
        %1845 = vset.pattern.permute.xlu0 0
        %1846 = vperm.xlu0 %1845, %v1737
        %v1847 = vpop.permute.xlu0 %1846
        %1848 = vset.pattern.permute.xlu0 0
        %1849 = vperm.xlu0 %1848, %v1738
        %v1850 = vpop.permute.xlu0 %1849
        %1851 = vset.pattern.permute.xlu0 0
        %1852 = vperm.xlu0 %1851, %v1739
        %v1853 = vpop.permute.xlu0 %1852
        %1854 = vset.pattern.permute.xlu0 0
        %1855 = vperm.xlu0 %1854, %v1740
        %v1856 = vpop.permute.xlu0 %1855
        %1857 = vset.pattern.permute.xlu0 0
        %1858 = vperm.xlu0 %1857, %v1741
        %v1859 = vpop.permute.xlu0 %1858
        %1860 = vset.pattern.permute.xlu0 0
        %1861 = vperm.xlu0 %1860, %v1742
        %v1862 = vpop.permute.xlu0 %1861
        %1863 = vset.pattern.permute.xlu0 0
        %1864 = vperm.xlu0 %1863, %v1743
        %v1865 = vpop.permute.xlu0 %1864
        %1866 = vset.pattern.permute.xlu0 0
        %1867 = vperm.xlu0 %1866, %v1744
        %v1868 = vpop.permute.xlu0 %1867
        %1869 = vset.pattern.permute.xlu0 0
        %1870 = vperm.xlu0 %1869, %v1745
        %v1871 = vpop.permute.xlu0 %1870
        %1872 = vset.pattern.permute.xlu0 0
        %1873 = vperm.xlu0 %1872, %v1746
        %v1874 = vpop.permute.xlu0 %1873
        %1875 = vset.pattern.permute.xlu0 0
        %1876 = vperm.xlu0 %1875, %v1747
        %v1877 = vpop.permute.xlu0 %1876
        %1878 = vset.pattern.permute.xlu0 0
        %1879 = vperm.xlu0 %1878, %v1748
        %v1880 = vpop.permute.xlu0 %1879
        %1881 = vset.pattern.permute.xlu0 0
        %1882 = vperm.xlu0 %1881, %v1749
        %v1883 = vpop.permute.xlu0 %1882
        %1884 = vset.pattern.permute.xlu0 0
        %1885 = vperm.xlu0 %1884, %v1750
        %v1886 = vpop.permute.xlu0 %1885
        %1887 = vset.pattern.permute.xlu0 0
        %1888 = vperm.xlu0 %1887, %v1751
        %v1889 = vpop.permute.xlu0 %1888
        %1890 = vset.pattern.permute.xlu0 0
        %1891 = vperm.xlu0 %1890, %v1752
        %v1892 = vpop.permute.xlu0 %1891
        %1893 = vset.pattern.permute.xlu0 0
        %1894 = vperm.xlu0 %1893, %v1753
        %v1895 = vpop.permute.xlu0 %1894
        %1896 = vset.pattern.permute.xlu0 0
        %1897 = vperm.xlu0 %1896, %v1754
        %v1898 = vpop.permute.xlu0 %1897
        %1899 = vset.pattern.permute.xlu0 0
        %1900 = vperm.xlu0 %1899, %v1755
        %v1901 = vpop.permute.xlu0 %1900
        %1902 = vset.pattern.permute.xlu0 0
        %1903 = vperm.xlu0 %1902, %v1756
        %v1904 = vpop.permute.xlu0 %1903
        %1905 = vset.pattern.permute.xlu0 0
        %1906 = vperm.xlu0 %1905, %v1757
        %v1907 = vpop.permute.xlu0 %1906
        %1908 = vset.pattern.permute.xlu0 0
        %1909 = vperm.xlu0 %1908, %v1758
        %v1910 = vpop.permute.xlu0 %1909
        %1911 = vset.pattern.permute.xlu0 0
        %1912 = vperm.xlu0 %1911, %v1759
        %v1913 = vpop.permute.xlu0 %1912
        %1914 = vset.pattern.permute.xlu0 0
        %1915 = vperm.xlu0 %1914, %v1760
        %v1916 = vpop.permute.xlu0 %1915
        %1917 = vset.pattern.permute.xlu0 0
        %1918 = vperm.xlu0 %1917, %v1761
        %v1919 = vpop.permute.xlu0 %1918
        %1920 = vset.pattern.permute.xlu0 0
        %1921 = vperm.xlu0 %1920, %v1762
        %v1922 = vpop.permute.xlu0 %1921
        %1923 = vset.pattern.permute.xlu0 0
        %1924 = vperm.xlu0 %1923, %v1763
        %v1925 = vpop.permute.xlu0 %1924
        %1926 = vset.pattern.permute.xlu0 0
        %1927 = vperm.xlu0 %1926, %v1764
        %v1928 = vpop.permute.xlu0 %1927
        %1929 = vset.pattern.permute.xlu0 0
        %1930 = vperm.xlu0 %1929, %v1765
        %v1931 = vpop.permute.xlu0 %1930
        %1932 = vset.pattern.permute.xlu0 0
        %1933 = vperm.xlu0 %1932, %v1766
        %v1934 = vpop.permute.xlu0 %1933
        %1935 = vset.pattern.permute.xlu0 0
        %1936 = vperm.xlu0 %1935, %v1767
        %v1937 = vpop.permute.xlu0 %1936
        %1938 = vset.pattern.permute.xlu0 0
        %1939 = vperm.xlu0 %1938, %v1768
        %v1940 = vpop.permute.xlu0 %1939
        %1941 = vset.pattern.permute.xlu0 0
        %1942 = vperm.xlu0 %1941, %v1769
        %v1943 = vpop.permute.xlu0 %1942
        %1944 = vset.pattern.permute.xlu0 0
        %1945 = vperm.xlu0 %1944, %v1770
        %v1946 = vpop.permute.xlu0 %1945
        %1947 = vset.pattern.permute.xlu0 0
        %1948 = vperm.xlu0 %1947, %v1771
        %v1949 = vpop.permute.xlu0 %1948
        %1950 = vset.pattern.permute.xlu0 0
        %1951 = vperm.xlu0 %1950, %v1772
        %v1952 = vpop.permute.xlu0 %1951
        %1953 = vset.pattern.permute.xlu0 0
        %1954 = vperm.xlu0 %1953, %v1773
        %v1955 = vpop.permute.xlu0 %1954
        %1956 = vset.pattern.permute.xlu0 0
        %1957 = vperm.xlu0 %1956, %v1774
        %v1958 = vpop.permute.xlu0 %1957
        %1959 = vset.pattern.permute.xlu0 0
        %1960 = vperm.xlu0 %1959, %v1775
        %v1961 = vpop.permute.xlu0 %1960
        %1962 = vset.pattern.permute.xlu0 0
        %1963 = vperm.xlu0 %1962, %v1776
        %v1964 = vpop.permute.xlu0 %1963
        %1965 = vset.pattern.permute.xlu0 0
        %1966 = vperm.xlu0 %1965, %v1777
        %v1967 = vpop.permute.xlu0 %1966
        %1968 = vset.pattern.permute.xlu0 0
        %1969 = vperm.xlu0 %1968, %v1778
        %v1970 = vpop.permute.xlu0 %1969
        %v1971 = vlaneseq
        %v1972 = vshrl.u32 %v1971, 7
        %v1973 = vsub.s32 %v663, %v1972
        %v1974 = vrot.slane %v1829, %v1973
        %v1975 = vadd.s32 %v663, 4294967288
        %v1976 = vlaneseq
        %v1977 = vshrl.u32 %v1976, 7
        %v1978 = vsub.s32 %v1975, %v1977
        %v1979 = vrot.slane %v1832, %v1978
        %vm1980 = vcmask 130112
        %v1981 = vsel %vm1980, %v1979, %v1974
        %v1982 = vadd.s32 %v663, 4294967280
        %v1983 = vlaneseq
        %v1984 = vshrl.u32 %v1983, 7
        %v1985 = vsub.s32 %v1982, %v1984
        %v1986 = vrot.slane %v1835, %v1985
        %vm1987 = vcmask 195712
        %v1988 = vsel %vm1987, %v1986, %v1981
        %v1989 = vadd.s32 %v663, 4294967272
        %v1990 = vlaneseq
        %v1991 = vshrl.u32 %v1990, 7
        %v1992 = vsub.s32 %v1989, %v1991
        %v1993 = vrot.slane %v1838, %v1992
        %vm1994 = vcmask 261312
        %v1995 = vsel %vm1994, %v1993, %v1988
        %v1996 = vadd.s32 %v663, 4294967264
        %v1997 = vlaneseq
        %v1998 = vshrl.u32 %v1997, 7
        %v1999 = vsub.s32 %v1996, %v1998
        %v2000 = vrot.slane %v1841, %v1999
        %vm2001 = vcmask 326912
        %v2002 = vsel %vm2001, %v2000, %v1995
        %v2003 = vadd.s32 %v663, 4294967256
        %v2004 = vlaneseq
        %v2005 = vshrl.u32 %v2004, 7
        %v2006 = vsub.s32 %v2003, %v2005
        %v2007 = vrot.slane %v1844, %v2006
        %vm2008 = vcmask 392512
        %v2009 = vsel %vm2008, %v2007, %v2002
        %v2010 = vlaneseq
        %v2011 = vshrl.u32 %v2010, 7
        %v2012 = vsub.s32 %v663, %v2011
        %v2013 = vrot.slane %v1847, %v2012
        %v2014 = vlaneseq
        %v2015 = vshrl.u32 %v2014, 7
        %v2016 = vsub.s32 %v1975, %v2015
        %v2017 = vrot.slane %v1850, %v2016
        %v2018 = vsel %vm1980, %v2017, %v2013
        %v2019 = vlaneseq
        %v2020 = vshrl.u32 %v2019, 7
        %v2021 = vsub.s32 %v1982, %v2020
        %v2022 = vrot.slane %v1853, %v2021
        %v2023 = vsel %vm1987, %v2022, %v2018
        %v2024 = vlaneseq
        %v2025 = vshrl.u32 %v2024, 7
        %v2026 = vsub.s32 %v1989, %v2025
        %v2027 = vrot.slane %v1856, %v2026
        %v2028 = vsel %vm1994, %v2027, %v2023
        %v2029 = vlaneseq
        %v2030 = vshrl.u32 %v2029, 7
        %v2031 = vsub.s32 %v1996, %v2030
        %v2032 = vrot.slane %v1859, %v2031
        %v2033 = vsel %vm2001, %v2032, %v2028
        %v2034 = vlaneseq
        %v2035 = vshrl.u32 %v2034, 7
        %v2036 = vsub.s32 %v2003, %v2035
        %v2037 = vrot.slane %v1862, %v2036
        %v2038 = vsel %vm2008, %v2037, %v2033
        %v2039 = vlaneseq
        %v2040 = vshrl.u32 %v2039, 7
        %v2041 = vsub.s32 %v663, %v2040
        %v2042 = vrot.slane %v1865, %v2041
        %v2043 = vlaneseq
        %v2044 = vshrl.u32 %v2043, 7
        %v2045 = vsub.s32 %v1975, %v2044
        %v2046 = vrot.slane %v1868, %v2045
        %v2047 = vsel %vm1980, %v2046, %v2042
        %v2048 = vlaneseq
        %v2049 = vshrl.u32 %v2048, 7
        %v2050 = vsub.s32 %v1982, %v2049
        %v2051 = vrot.slane %v1871, %v2050
        %v2052 = vsel %vm1987, %v2051, %v2047
        %v2053 = vlaneseq
        %v2054 = vshrl.u32 %v2053, 7
        %v2055 = vsub.s32 %v1989, %v2054
        %v2056 = vrot.slane %v1874, %v2055
        %v2057 = vsel %vm1994, %v2056, %v2052
        %v2058 = vlaneseq
        %v2059 = vshrl.u32 %v2058, 7
        %v2060 = vsub.s32 %v1996, %v2059
        %v2061 = vrot.slane %v1877, %v2060
        %v2062 = vsel %vm2001, %v2061, %v2057
        %v2063 = vlaneseq
        %v2064 = vshrl.u32 %v2063, 7
        %v2065 = vsub.s32 %v2003, %v2064
        %v2066 = vrot.slane %v1880, %v2065
        %v2067 = vsel %vm2008, %v2066, %v2062
        %v2068 = vlaneseq
        %v2069 = vshrl.u32 %v2068, 7
        %v2070 = vsub.s32 %v663, %v2069
        %v2071 = vrot.slane %v1883, %v2070
        %v2072 = vlaneseq
        %v2073 = vshrl.u32 %v2072, 7
        %v2074 = vsub.s32 %v1975, %v2073
        %v2075 = vrot.slane %v1886, %v2074
        %v2076 = vsel %vm1980, %v2075, %v2071
        %v2077 = vlaneseq
        %v2078 = vshrl.u32 %v2077, 7
        %v2079 = vsub.s32 %v1982, %v2078
        %v2080 = vrot.slane %v1889, %v2079
        %v2081 = vsel %vm1987, %v2080, %v2076
        %v2082 = vlaneseq
        %v2083 = vshrl.u32 %v2082, 7
        %v2084 = vsub.s32 %v1989, %v2083
        %v2085 = vrot.slane %v1892, %v2084
        %v2086 = vsel %vm1994, %v2085, %v2081
        %v2087 = vlaneseq
        %v2088 = vshrl.u32 %v2087, 7
        %v2089 = vsub.s32 %v1996, %v2088
        %v2090 = vrot.slane %v1895, %v2089
        %v2091 = vsel %vm2001, %v2090, %v2086
        %v2092 = vlaneseq
        %v2093 = vshrl.u32 %v2092, 7
        %v2094 = vsub.s32 %v2003, %v2093
        %v2095 = vrot.slane %v1898, %v2094
        %v2096 = vsel %vm2008, %v2095, %v2091
        %v2097 = vlaneseq
        %v2098 = vshrl.u32 %v2097, 7
        %v2099 = vsub.s32 %v663, %v2098
        %v2100 = vrot.slane %v1901, %v2099
        %v2101 = vlaneseq
        %v2102 = vshrl.u32 %v2101, 7
        %v2103 = vsub.s32 %v1975, %v2102
        %v2104 = vrot.slane %v1904, %v2103
        %v2105 = vsel %vm1980, %v2104, %v2100
        %v2106 = vlaneseq
        %v2107 = vshrl.u32 %v2106, 7
        %v2108 = vsub.s32 %v1982, %v2107
        %v2109 = vrot.slane %v1907, %v2108
        %v2110 = vsel %vm1987, %v2109, %v2105
        %v2111 = vlaneseq
        %v2112 = vshrl.u32 %v2111, 7
        %v2113 = vsub.s32 %v1989, %v2112
        %v2114 = vrot.slane %v1910, %v2113
        %v2115 = vsel %vm1994, %v2114, %v2110
        %v2116 = vlaneseq
        %v2117 = vshrl.u32 %v2116, 7
        %v2118 = vsub.s32 %v1996, %v2117
        %v2119 = vrot.slane %v1913, %v2118
        %v2120 = vsel %vm2001, %v2119, %v2115
        %v2121 = vlaneseq
        %v2122 = vshrl.u32 %v2121, 7
        %v2123 = vsub.s32 %v2003, %v2122
        %v2124 = vrot.slane %v1916, %v2123
        %v2125 = vsel %vm2008, %v2124, %v2120
        %v2126 = vlaneseq
        %v2127 = vshrl.u32 %v2126, 7
        %v2128 = vsub.s32 %v663, %v2127
        %v2129 = vrot.slane %v1919, %v2128
        %v2130 = vlaneseq
        %v2131 = vshrl.u32 %v2130, 7
        %v2132 = vsub.s32 %v1975, %v2131
        %v2133 = vrot.slane %v1922, %v2132
        %v2134 = vsel %vm1980, %v2133, %v2129
        %v2135 = vlaneseq
        %v2136 = vshrl.u32 %v2135, 7
        %v2137 = vsub.s32 %v1982, %v2136
        %v2138 = vrot.slane %v1925, %v2137
        %v2139 = vsel %vm1987, %v2138, %v2134
        %v2140 = vlaneseq
        %v2141 = vshrl.u32 %v2140, 7
        %v2142 = vsub.s32 %v1989, %v2141
        %v2143 = vrot.slane %v1928, %v2142
        %v2144 = vsel %vm1994, %v2143, %v2139
        %v2145 = vlaneseq
        %v2146 = vshrl.u32 %v2145, 7
        %v2147 = vsub.s32 %v1996, %v2146
        %v2148 = vrot.slane %v1931, %v2147
        %v2149 = vsel %vm2001, %v2148, %v2144
        %v2150 = vlaneseq
        %v2151 = vshrl.u32 %v2150, 7
        %v2152 = vsub.s32 %v2003, %v2151
        %v2153 = vrot.slane %v1934, %v2152
        %v2154 = vsel %vm2008, %v2153, %v2149
        %v2155 = vlaneseq
        %v2156 = vshrl.u32 %v2155, 7
        %v2157 = vsub.s32 %v663, %v2156
        %v2158 = vrot.slane %v1937, %v2157
        %v2159 = vlaneseq
        %v2160 = vshrl.u32 %v2159, 7
        %v2161 = vsub.s32 %v1975, %v2160
        %v2162 = vrot.slane %v1940, %v2161
        %v2163 = vsel %vm1980, %v2162, %v2158
        %v2164 = vlaneseq
        %v2165 = vshrl.u32 %v2164, 7
        %v2166 = vsub.s32 %v1982, %v2165
        %v2167 = vrot.slane %v1943, %v2166
        %v2168 = vsel %vm1987, %v2167, %v2163
        %v2169 = vlaneseq
        %v2170 = vshrl.u32 %v2169, 7
        %v2171 = vsub.s32 %v1989, %v2170
        %v2172 = vrot.slane %v1946, %v2171
        %v2173 = vsel %vm1994, %v2172, %v2168
        %v2174 = vlaneseq
        %v2175 = vshrl.u32 %v2174, 7
        %v2176 = vsub.s32 %v1996, %v2175
        %v2177 = vrot.slane %v1949, %v2176
        %v2178 = vsel %vm2001, %v2177, %v2173
        %v2179 = vlaneseq
        %v2180 = vshrl.u32 %v2179, 7
        %v2181 = vsub.s32 %v2003, %v2180
        %v2182 = vrot.slane %v1952, %v2181
        %v2183 = vsel %vm2008, %v2182, %v2178
        %v2184 = vlaneseq
        %v2185 = vshrl.u32 %v2184, 7
        %v2186 = vsub.s32 %v663, %v2185
        %v2187 = vrot.slane %v1955, %v2186
        %v2188 = vlaneseq
        %v2189 = vshrl.u32 %v2188, 7
        %v2190 = vsub.s32 %v1975, %v2189
        %v2191 = vrot.slane %v1958, %v2190
        %v2192 = vsel %vm1980, %v2191, %v2187
        %v2193 = vlaneseq
        %v2194 = vshrl.u32 %v2193, 7
        %v2195 = vsub.s32 %v1982, %v2194
        %v2196 = vrot.slane %v1961, %v2195
        %v2197 = vsel %vm1987, %v2196, %v2192
        %v2198 = vlaneseq
        %v2199 = vshrl.u32 %v2198, 7
        %v2200 = vsub.s32 %v1989, %v2199
        %v2201 = vrot.slane %v1964, %v2200
        %v2202 = vsel %vm1994, %v2201, %v2197
        %v2203 = vlaneseq
        %v2204 = vshrl.u32 %v2203, 7
        %v2205 = vsub.s32 %v1996, %v2204
        %v2206 = vrot.slane %v1967, %v2205
        %v2207 = vsel %vm2001, %v2206, %v2202
        %v2208 = vlaneseq
        %v2209 = vshrl.u32 %v2208, 7
        %v2210 = vsub.s32 %v2003, %v2209
        %v2211 = vrot.slane %v1970, %v2210
        %v2212 = vsel %vm2008, %v2211, %v2207
        %v2213 = vsel %vm696, %v2038, %v2009
        %v2214 = vsel %vm698, %v2067, %v2213
        %v2215 = vsel %vm700, %v2096, %v2214
        %v2216 = vsel %vm702, %v2125, %v2215
        %v2217 = vsel %vm704, %v2154, %v2216
        %v2218 = vsel %vm706, %v2183, %v2217
        %v2219 = vsel %vm708, %v2212, %v2218
        %vm2221 = vcmask 392192
        %2222 = vst.msk [vmem:[#allocation2] sm:$0xff] %vm2221, %v2219
        %v2223 = vld [vmem:[#allocation2] sm:$0xff]
        %v2224 = vsel %vm2221, %v2223, -inf
        %2225 = vmax.xlane.f32.xlu0 %v2224
        %v2226 = vpop.xlane.xlu0 %2225
        %v2227 = vsub.f32 %v2223, %v2226
        %v2228 = vmul.f32 %v2227, 1.442695
        %v2229 = vpow.pop %v2228
        %v2230 = vpack.c.bf16 %v2229, %v2229
        %v2232 = vsel %vm2221, %v2230, 0
        %v2235 = vsel %vm2221, %v325, 0
        %2237 = vmatprep.subr.bf16.mxu0 0
        %2238 = vmatpush1.bf16.xpose.msra.mxu0 0
        %2239 = vmatprep.subr.bf16.mxu0 0
        %2240 = vmatpush1.bf16.xpose.msra.mxu0 0
        %2241 = vmatprep.subr.bf16.mxu0 0
        %2242 = vmatpush1.bf16.xpose.msra.mxu0 0
        %2243 = vmatprep.subr.bf16.mxu0 0
        %2244 = vmatpush1.bf16.xpose.msra.mxu0 0
        %2245 = vmatprep.subr.bf16.mxu0 0
        %2246 = vmatpush1.bf16.xpose.msra.mxu0 0
        %2247 = vmatprep.subr.bf16.mxu0 0
        %2248 = vmatpush1.bf16.xpose.msra.mxu0 0
        %2249 = vmatprep.subr.bf16.mxu0 0
        %2250 = vmatpush1.bf16.xpose.msra.mxu0 0
        %2251 = vmatprep.subr.bf16.mxu0 0
        %2252 = vmatpush1.bf16.xpose.msra.mxu0 %v2235
        %2253 = vmatprep.subr.bf16.mxu0 0
        %2254 = vmatpush2.bf16.xpose.msra.mxu0 0
        %2255 = vmatprep.subr.bf16.mxu0 0
        %2256 = vmatpush2.bf16.xpose.msra.mxu0 0
        %2257 = vmatprep.subr.bf16.mxu0 0
        %2258 = vmatpush2.bf16.xpose.msra.mxu0 0
        %2259 = vmatprep.subr.bf16.mxu0 0
        %2260 = vmatpush2.bf16.xpose.msra.mxu0 0
        %2261 = vmatprep.subr.bf16.mxu0 0
        %2262 = vmatpush2.bf16.xpose.msra.mxu0 0
        %2263 = vmatprep.subr.bf16.mxu0 0
        %2264 = vmatpush2.bf16.xpose.msra.mxu0 0
        %2265 = vmatprep.subr.bf16.mxu0 0
        %2266 = vmatpush2.bf16.xpose.msra.mxu0 0
        %2267 = vmatprep.subr.bf16.mxu0 0
        %2268 = vmatpush2.bf16.xpose.msra.mxu0 0
        %2269 = vmatprep.mubr.bf16.mxu0 0
        %2270 = vmatmul.mubr.bf16.gmra.mxu0 %v2232
        %v2271 = vpop.f32.mrf.mxu0
        %v2272 = vadd.f32 0.0, %v2271
        %v2273 = vpop.f32.mrf.mxu0
        %v2274 = vpop.f32.mrf.mxu0
        %v2275 = vpop.f32.mrf.mxu0
        %2276 = vdwg.mxu0
        %vm2277 = vcmp.gt.f32.partialorder %v2272, 0.0
        %v2278 = vrcp.pop %v2272
        %v2280 = vlaneseq
        %v2281 = vshrl.u32 %v2280, 7
        %v2282 = vsub.s32 0, %v2281
        %v2283 = vrot.slane %v2278, %v2282
        %2285 = vbcast.lane.b32.xlu0 %v2283, 256
        %v2286 = vpop.permute.xlu0 %2285
        %v2287 = vlaneseq
        %v2288 = vshrl.u32 %v2287, 7
        %v2289 = vsub.s32 1, %v2288
        %v2290 = vrot.slane %v2278, %v2289
        %2292 = vbcast.lane.b32.xlu0 %v2290, 256
        %v2293 = vpop.permute.xlu0 %2292
        %v2294 = vlaneseq
        %v2295 = vshrl.u32 %v2294, 7
        %v2296 = vsub.s32 2, %v2295
        %v2297 = vrot.slane %v2278, %v2296
        %2299 = vbcast.lane.b32.xlu0 %v2297, 256
        %v2300 = vpop.permute.xlu0 %2299
        %v2301 = vlaneseq
        %v2302 = vshrl.u32 %v2301, 7
        %v2303 = vsub.s32 3, %v2302
        %v2304 = vrot.slane %v2278, %v2303
        %2306 = vbcast.lane.b32.xlu0 %v2304, 256
        %v2307 = vpop.permute.xlu0 %2306
        %v2308 = vlaneseq
        %v2309 = vshrl.u32 %v2308, 7
        %v2310 = vsub.s32 4, %v2309
        %v2311 = vrot.slane %v2278, %v2310
        %2313 = vbcast.lane.b32.xlu0 %v2311, 256
        %v2314 = vpop.permute.xlu0 %2313
        %v2315 = vlaneseq
        %v2316 = vshrl.u32 %v2315, 7
        %v2317 = vsub.s32 5, %v2316
        %v2318 = vrot.slane %v2278, %v2317
        %2320 = vbcast.lane.b32.xlu0 %v2318, 256
        %v2321 = vpop.permute.xlu0 %2320
        %v2322 = vlaneseq
        %v2323 = vshrl.u32 %v2322, 7
        %v2324 = vsub.s32 6, %v2323
        %v2325 = vrot.slane %v2278, %v2324
        %2327 = vbcast.lane.b32.xlu0 %v2325, 256
        %v2328 = vpop.permute.xlu0 %2327
        %v2329 = vlaneseq
        %v2330 = vshrl.u32 %v2329, 7
        %v2331 = vsub.s32 7, %v2330
        %v2332 = vrot.slane %v2278, %v2331
        %2334 = vbcast.lane.b32.xlu0 %v2332, 256
        %v2335 = vpop.permute.xlu0 %2334
        %v2344 = vmul.f32 %v897, %v2286
        %v2345 = vmul.f32 %v898, %v2293
        %v2346 = vmul.f32 %v899, %v2300
        %v2347 = vmul.f32 %v900, %v2307
        %v2348 = vmul.f32 %v901, %v2314
        %v2349 = vmul.f32 %v902, %v2321
        %v2350 = vmul.f32 %v903, %v2328
        %v2351 = vmul.f32 %v904, %v2335
        %2360 = vset.pattern.permute.xlu0 0
        %2361 = vperm.xlu0 %2360, %v2344
        %v2362 = vpop.permute.xlu0 %2361
        %2363 = vset.pattern.permute.xlu0 0
        %2364 = vperm.xlu0 %2363, %v2345
        %v2365 = vpop.permute.xlu0 %2364
        %2366 = vset.pattern.permute.xlu0 0
        %2367 = vperm.xlu0 %2366, %v2346
        %v2368 = vpop.permute.xlu0 %2367
        %2369 = vset.pattern.permute.xlu0 0
        %2370 = vperm.xlu0 %2369, %v2347
        %v2371 = vpop.permute.xlu0 %2370
        %2372 = vset.pattern.permute.xlu0 0
        %2373 = vperm.xlu0 %2372, %v2348
        %v2374 = vpop.permute.xlu0 %2373
        %2375 = vset.pattern.permute.xlu0 0
        %2376 = vperm.xlu0 %2375, %v2349
        %v2377 = vpop.permute.xlu0 %2376
        %2378 = vset.pattern.permute.xlu0 0
        %2379 = vperm.xlu0 %2378, %v2350
        %v2380 = vpop.permute.xlu0 %2379
        %2381 = vset.pattern.permute.xlu0 0
        %2382 = vperm.xlu0 %2381, %v2351
        %v2383 = vpop.permute.xlu0 %2382
        %v2384 = vlaneseq
        %v2385 = vshrl.u32 %v2384, 7
        %v2386 = vsub.s32 %v663, %v2385
        %v2387 = vrot.slane %v2362, %v2386
        %v2388 = vlaneseq
        %v2389 = vshrl.u32 %v2388, 7
        %v2390 = vsub.s32 %v663, %v2389
        %v2391 = vrot.slane %v2365, %v2390
        %v2392 = vlaneseq
        %v2393 = vshrl.u32 %v2392, 7
        %v2394 = vsub.s32 %v663, %v2393
        %v2395 = vrot.slane %v2368, %v2394
        %v2396 = vlaneseq
        %v2397 = vshrl.u32 %v2396, 7
        %v2398 = vsub.s32 %v663, %v2397
        %v2399 = vrot.slane %v2371, %v2398
        %v2400 = vlaneseq
        %v2401 = vshrl.u32 %v2400, 7
        %v2402 = vsub.s32 %v663, %v2401
        %v2403 = vrot.slane %v2374, %v2402
        %v2404 = vlaneseq
        %v2405 = vshrl.u32 %v2404, 7
        %v2406 = vsub.s32 %v663, %v2405
        %v2407 = vrot.slane %v2377, %v2406
        %v2408 = vlaneseq
        %v2409 = vshrl.u32 %v2408, 7
        %v2410 = vsub.s32 %v663, %v2409
        %v2411 = vrot.slane %v2380, %v2410
        %v2412 = vlaneseq
        %v2413 = vshrl.u32 %v2412, 7
        %v2414 = vsub.s32 %v663, %v2413
        %v2415 = vrot.slane %v2383, %v2414
        %v2416 = vsel %vm696, %v2391, %v2387
        %v2417 = vsel %vm698, %v2395, %v2416
        %v2418 = vsel %vm700, %v2399, %v2417
        %v2419 = vsel %vm702, %v2403, %v2418
        %v2420 = vsel %vm704, %v2407, %v2419
        %v2421 = vsel %vm706, %v2411, %v2420
        %v2422 = vsel %vm708, %v2415, %v2421
        %v2424 = vsel %vm2277, %v2422, 0.0
        %v2425 = vpack.c.bf16 %v2424, %v2424
        %v2427 = vsel %vm711, %v2425, 0
        %vm2429 = vcmask 1043456
        %v2430 = vsel %vm2429, %v325, 0
        %2432 = vmatprep.subr.bf16.mxu0 0
        %2433 = vmatpush1.bf16.msra.mxu0 0
        %2434 = vmatprep.subr.bf16.mxu0 0
        %2435 = vmatpush1.bf16.msra.mxu0 0
        %2436 = vmatprep.subr.bf16.mxu0 0
        %2437 = vmatpush1.bf16.msra.mxu0 0
        %2438 = vmatprep.subr.bf16.mxu0 0
        %2439 = vmatpush1.bf16.msra.mxu0 0
        %2440 = vmatprep.subr.bf16.mxu0 0
        %2441 = vmatpush1.bf16.msra.mxu0 0
        %2442 = vmatprep.subr.bf16.mxu0 0
        %2443 = vmatpush1.bf16.msra.mxu0 0
        %2444 = vmatprep.subr.bf16.mxu0 0
        %2445 = vmatpush1.bf16.msra.mxu0 0
        %2446 = vmatprep.subr.bf16.mxu0 0
        %2447 = vmatpush1.bf16.msra.mxu0 %v2430
        %2448 = vmatprep.subr.bf16.mxu0 0
        %2449 = vmatpush2.bf16.msra.mxu0 0
        %2450 = vmatprep.subr.bf16.mxu0 0
        %2451 = vmatpush2.bf16.msra.mxu0 0
        %2452 = vmatprep.subr.bf16.mxu0 0
        %2453 = vmatpush2.bf16.msra.mxu0 0
        %2454 = vmatprep.subr.bf16.mxu0 0
        %2455 = vmatpush2.bf16.msra.mxu0 0
        %2456 = vmatprep.subr.bf16.mxu0 0
        %2457 = vmatpush2.bf16.msra.mxu0 0
        %2458 = vmatprep.subr.bf16.mxu0 0
        %2459 = vmatpush2.bf16.msra.mxu0 0
        %2460 = vmatprep.subr.bf16.mxu0 0
        %2461 = vmatpush2.bf16.msra.mxu0 0
        %2462 = vmatprep.subr.bf16.mxu0 0
        %2463 = vmatpush2.bf16.msra.mxu0 0
        %2464 = vmatprep.mubr.bf16.mxu0 0
        %2465 = vmatmul.mubr.bf16.gmra.mxu0 %v2427
        %v2466 = vpop.f32.mrf.mxu0
        %v2467 = vadd.f32 0.0, %v2466
        %v2468 = vpop.f32.mrf.mxu0
        %v2469 = vpop.f32.mrf.mxu0
        %v2470 = vpop.f32.mrf.mxu0
        %2471 = vdwg.mxu0
        %v2472 = vmul.f32 %v2229, %v2467
        %2481 = vset.pattern.permute.xlu0 0
        %2482 = vperm.xlu0 %2481, %v897
        %v2483 = vpop.permute.xlu0 %2482
        %2484 = vset.pattern.permute.xlu0 0
        %2485 = vperm.xlu0 %2484, %v898
        %v2486 = vpop.permute.xlu0 %2485
        %2487 = vset.pattern.permute.xlu0 0
        %2488 = vperm.xlu0 %2487, %v899
        %v2489 = vpop.permute.xlu0 %2488
        %2490 = vset.pattern.permute.xlu0 0
        %2491 = vperm.xlu0 %2490, %v900
        %v2492 = vpop.permute.xlu0 %2491
        %2493 = vset.pattern.permute.xlu0 0
        %2494 = vperm.xlu0 %2493, %v901
        %v2495 = vpop.permute.xlu0 %2494
        %2496 = vset.pattern.permute.xlu0 0
        %2497 = vperm.xlu0 %2496, %v902
        %v2498 = vpop.permute.xlu0 %2497
        %2499 = vset.pattern.permute.xlu0 0
        %2500 = vperm.xlu0 %2499, %v903
        %v2501 = vpop.permute.xlu0 %2500
        %2502 = vset.pattern.permute.xlu0 0
        %2503 = vperm.xlu0 %2502, %v904
        %v2504 = vpop.permute.xlu0 %2503
        %v2505 = vadd.s32 %v663, 4294967248
        %v2506 = vlaneseq
        %v2507 = vshrl.u32 %v2506, 7
        %v2508 = vsub.s32 %v2505, %v2507
        %v2509 = vrot.slane %v2483, %v2508
        %v2510 = vlaneseq
        %v2511 = vshrl.u32 %v2510, 7
        %v2512 = vsub.s32 %v2505, %v2511
        %v2513 = vrot.slane %v2486, %v2512
        %v2514 = vlaneseq
        %v2515 = vshrl.u32 %v2514, 7
        %v2516 = vsub.s32 %v2505, %v2515
        %v2517 = vrot.slane %v2489, %v2516
        %v2518 = vlaneseq
        %v2519 = vshrl.u32 %v2518, 7
        %v2520 = vsub.s32 %v2505, %v2519
        %v2521 = vrot.slane %v2492, %v2520
        %v2522 = vlaneseq
        %v2523 = vshrl.u32 %v2522, 7
        %v2524 = vsub.s32 %v2505, %v2523
        %v2525 = vrot.slane %v2495, %v2524
        %v2526 = vlaneseq
        %v2527 = vshrl.u32 %v2526, 7
        %v2528 = vsub.s32 %v2505, %v2527
        %v2529 = vrot.slane %v2498, %v2528
        %v2530 = vlaneseq
        %v2531 = vshrl.u32 %v2530, 7
        %v2532 = vsub.s32 %v2505, %v2531
        %v2533 = vrot.slane %v2501, %v2532
        %v2534 = vlaneseq
        %v2535 = vshrl.u32 %v2534, 7
        %v2536 = vsub.s32 %v2505, %v2535
        %v2537 = vrot.slane %v2504, %v2536
        %v2538 = vsel %vm696, %v2513, %v2509
        %v2539 = vsel %vm698, %v2517, %v2538
        %v2540 = vsel %vm700, %v2521, %v2539
        %v2541 = vsel %vm702, %v2525, %v2540
        %v2542 = vsel %vm704, %v2529, %v2541
        %v2543 = vsel %vm706, %v2533, %v2542
        %v2544 = vsel %vm708, %v2537, %v2543
        %v2546 = vsel %vm2221, %v2472, %v2544
        %v2547 = vpack.c.bf16 %v2546, %v2546
        %v2548 = vld [vmem:[%s304] sm:$0xf]
        %v2549 = vld [vmem:[%s304 + $0x4] sm:$0xf]
        %v2550 = vld [vmem:[%s304 + $0x8] sm:$0xf]
        %v2551 = vld [vmem:[%s304 + $0xc] sm:$0xf]
        %v2552 = vld [vmem:[%s304 + $0x10] sm:$0xf]
        %v2553 = vld [vmem:[%s304 + $0x14] sm:$0xf]
        %v2554 = vld [vmem:[%s304 + $0x18] sm:$0xf]
        %v2562 = vunpack.c.l.b16 %v2548
        %v2563 = vunpack.c.l.b16 %v2549
        %v2564 = vunpack.c.l.b16 %v2550
        %v2565 = vunpack.c.l.b16 %v2551
        %v2566 = vunpack.c.l.b16 %v2552
        %v2567 = vunpack.c.l.b16 %v2553
        %v2568 = vunpack.c.l.b16 %v2554
        %v2569 = vpack.c.b16 %v2563, %v2562
        %v2570 = vpack.c.b16 %v2565, %v2564
        %v2571 = vpack.c.b16 %v2567, %v2566
        %v2572 = vpack.c.b16 %v2568, %v2568
        %vm2576 = vcmask 457728
        %v2578 = vsel %vm2576, %v2547, 0
        %v2581 = vsel %vm2429, %v2572, 0
        %2583 = vmatprep.subr.bf16.mxu0 0
        %2584 = vmatpush1.bf16.msra.mxu0 0
        %2585 = vmatprep.subr.bf16.mxu0 0
        %2586 = vmatpush1.bf16.msra.mxu0 0
        %2587 = vmatprep.subr.bf16.mxu0 0
        %2588 = vmatpush1.bf16.msra.mxu0 0
        %2589 = vmatprep.subr.bf16.mxu0 0
        %2590 = vmatpush1.bf16.msra.mxu0 0
        %2591 = vmatprep.subr.bf16.mxu0 0
        %2592 = vmatpush1.bf16.msra.mxu0 %v2581
        %2593 = vmatprep.subr.bf16.mxu0 0
        %2594 = vmatpush1.bf16.msra.mxu0 %v2571
        %2595 = vmatprep.subr.bf16.mxu0 0
        %2596 = vmatpush1.bf16.msra.mxu0 %v2570
        %2597 = vmatprep.subr.bf16.mxu0 0
        %2598 = vmatpush1.bf16.msra.mxu0 %v2569
        %2599 = vmatprep.subr.bf16.mxu0 0
        %2600 = vmatpush2.bf16.msra.mxu0 0
        %2601 = vmatprep.subr.bf16.mxu0 0
        %2602 = vmatpush2.bf16.msra.mxu0 0
        %2603 = vmatprep.subr.bf16.mxu0 0
        %2604 = vmatpush2.bf16.msra.mxu0 0
        %2605 = vmatprep.subr.bf16.mxu0 0
        %2606 = vmatpush2.bf16.msra.mxu0 0
        %2607 = vmatprep.subr.bf16.mxu0 0
        %2608 = vmatpush2.bf16.msra.mxu0 0
        %2609 = vmatprep.subr.bf16.mxu0 0
        %2610 = vmatpush2.bf16.msra.mxu0 0
        %2611 = vmatprep.subr.bf16.mxu0 0
        %2612 = vmatpush2.bf16.msra.mxu0 0
        %2613 = vmatprep.subr.bf16.mxu0 0
        %2614 = vmatpush2.bf16.msra.mxu0 0
        %2615 = vmatprep.mubr.bf16.mxu0 0
        %2616 = vmatmul.mubr.bf16.gmra.mxu0 %v2578
        %v2617 = vpop.f32.mrf.mxu0
        %v2618 = vadd.f32 0.0, %v2617
        %v2619 = vpop.f32.mrf.mxu0
        %v2620 = vpop.f32.mrf.mxu0
        %v2621 = vpop.f32.mrf.mxu0
        %2622 = vdwg.mxu0
        %2623 = vst.msk [vmem:[%s295] sm:$0xff] %vm340, %v2618
        %s2624 = sand.u32 %s191, 1
        %s2625 = scalar_lea.sflag [#allocation4], %s2624
        %s2626 = sand.u32 %s191, 1
        %s2627 = smul.addr %s2626, 8
        %s2628 = scalar_lea.vmem [#allocation3], %s2627
        // Predicated region
        $region49: #{tpu_custom_call.1} parent=47 // pred_check
          %p2629 = pneg %p201
        $region50: #{tpu_custom_call.1} parent=47 // pred_check_branch
          %2631 = sbr.rel (%p2629) target = $region52
        $region51: #{tpu_custom_call.1} parent=47 // pred_region
          %s2633 = ssub.s32 128, 128
          %2634 = vsyncadd %s2625, %s2633
          %s2635 = smul.addr %s21, 128
          %s2636 = scalar_lea.hbm %s7, %s2635
          %s2638 = sshll.u32 %s2628, 4
          %s2639 = int_to_ptr.vmem [resolvable:$true] %s2638
          %2641 = dma.vmem_to_hbm [thread:$0]  %s2639, 128, %s2636, %s2625
        $region52: #{tpu_custom_call.1} parent=47 // pred_fallthru
          _
      $region48: #{tpu_custom_call.1} parent=5 // pred_fallthru
        _
      %p2642 = scmp.le.s32.totalorder 2, %s16
      // Predicated region
      $region53: #{tpu_custom_call.1} parent=5 // pred_check
        %p2643 = pneg %p2642
      $region54: #{tpu_custom_call.1} parent=5 // pred_check_branch
        %2645 = sbr.rel (%p2643) target = $region56
      $region55: #{tpu_custom_call.1} parent=5 // pred_region
        %s2646 = ssub.s32 %s16, 2
        // Predicated region
        $region57: #{tpu_custom_call.1} parent=55 // pred_check
          %p2647 = pneg %p207
        $region58: #{tpu_custom_call.1} parent=55 // pred_check_branch
          %2649 = sbr.rel (%p2647) target = $region60
        $region59: #{tpu_custom_call.1} parent=55 // pred_region
          %s2650 = sand.u32 %s192, 1
          %s2651 = scalar_lea.sflag [#allocation4], %s2650
          %s2652 = sand.u32 %s192, 1
          %s2653 = smul.addr %s2652, 8
          %s2654 = scalar_lea.vmem [#allocation3], %s2653
          %2655 = dma.done %s2651, 128
        $region60: #{tpu_custom_call.1} parent=55 // pred_fallthru
          _
      $region56: #{tpu_custom_call.1} parent=5 // pred_fallthru
        _
    $region6: #{tpu_custom_call.1} parent=1 // loop_footer
      %s20 = sadd.s32 1, %s16
    $region7: #{tpu_custom_call.1} parent=1 // loop_footer_branch
      %15 = sbr.rel target = $region3
    $region8: #{tpu_custom_call.1} parent=1 // loop_exit
      _
    %2656 = vsyncpa [#allocation4], 1
    %s2657 = scalar_lea.sflag [#allocation4], 1
    %2658 = vsyncpa %s2657, 1

</llo_original>
